<compile_context>
chip_gen: v7x
topology: tpu7x:2x2x1
jax: 0.10.0
libtpu: 0.0.40
codegen_flags: <defaults>
</compile_context>

<pallas_src>
import functools
import math

import jax
import jax.numpy as jnp
from jax.experimental import pallas as pl
from jax.experimental.pallas import tpu as pltpu


def _attn_kernel(x_ref, wq_ref, wk_ref, wv_ref, bq_ref, bk_ref, bv_ref,
                 gamma_ref, o_ref, *, inv_sqrt_c):
    # x_ref block: (TB, C, N) -- a pure reshape of the NCHW input.
    x_cn = x_ref[...].astype(jnp.float32)                    # (TB, C, N)
    tb, c, n = x_cn.shape
    cq = wq_ref.shape[1]

    # One in-VMEM transpose (XLU) instead of a wrapper-side HBM transpose.
    x_nc = jnp.transpose(x_cn, (0, 2, 1))                    # (TB, N, C)

    # Fold the batch tile into the M dimension of the projection matmuls so
    # the MXU sees M = TB*N rows instead of N.
    x2d = x_nc.reshape(tb * n, c)                            # (TB*N, C)

    # 1x1 convs == per-pixel linear projections.  1/sqrt(C) folded into q.
    q2d = (jnp.dot(x2d, wq_ref[...], preferred_element_type=jnp.float32)
           + bq_ref[...]) * inv_sqrt_c                       # (TB*N, Cq)
    k2d = (jnp.dot(x2d, wk_ref[...], preferred_element_type=jnp.float32)
           + bk_ref[...])                                    # (TB*N, Cq)
    v2d = (jnp.dot(x2d, wv_ref[...], preferred_element_type=jnp.float32)
           + bv_ref[...])                                    # (TB*N, C)

    q3 = q2d.reshape(tb, n, cq)
    k3 = k2d.reshape(tb, n, cq)
    v3 = v2d.reshape(tb, n, c)

    # energy[b,i,j] = <q_i, k_j> / sqrt(C); contraction on the last dim of both
    # operands (no explicit k.T).
    # TODO(synk): for large W*H, tile the key axis with an online-softmax
    # (flash-style) accumulator so the (TB, N, N) energy never materializes in
    # VMEM (required on v7x's 64 MiB VMEM), and set vmem_limit_bytes.
    energy = jnp.einsum('bnd,bmd->bnm', q3, k3,
                        preferred_element_type=jnp.float32)  # (TB, N, N)
    m = jnp.max(energy, axis=-1, keepdims=True)
    p = jnp.exp(energy - m)
    denom = jnp.sum(p, axis=-1, keepdims=True)
    att = p * pl.reciprocal(denom, approx=True)              # EUP, ~free

    # out[b,i,c] = sum_j att[b,i,j] * v[b,j,c]
    out_nc = jnp.einsum('bnm,bmc->bnc', att, v3,
                        preferred_element_type=jnp.float32)  # (TB, N, C)

    # Back to (TB, C, N) so the store (and HBM output) keep the NCHW-flattened
    # layout: lane dim is N (lane-dense for realistic spatial sizes).
    out_cn = jnp.transpose(out_nc, (0, 2, 1))                # (TB, C, N)
    gamma = gamma_ref[0]                                     # SMEM scalar
    o_ref[...] = (gamma * out_cn + x_cn).astype(o_ref.dtype)


def _pick_batch_tile(B, N):
    """Largest divisor of B that gives >=128 projection rows, VMEM-bounded."""
    target = max(1, -(-128 // N))                      # ceil(128 / N) batches
    vmem_cap = max(1, (8 * 1024 * 1024) // max(1, 4 * N * N))  # energy budget
    target = min(B, target, vmem_cap)
    for tb in range(target, 0, -1):
        if B % tb == 0:
            return tb
    return 1


def cnn_self_attention(x, wq, bq, wk, bk, wv, bv, gamma, *, n_heads,
                       batch_tile=None):
    """x: (B, C, W, H) float32; conv weights in PyTorch Conv2d layout (out, in, 1, 1)."""
    B, C, W, H = x.shape
    N = W * H
    Cq = C // n_heads

    # Pure reshape only -- no HBM transpose of the activations.
    x_bcn = x.reshape(B, C, N)

    # Pre-transpose the tiny 1x1-conv weights to (in, out) so the kernel does x @ W.
    wq_t = wq.reshape(Cq, C).T          # (C, Cq)
    wk_t = wk.reshape(Cq, C).T          # (C, Cq)
    wv_t = wv.reshape(C, C).T           # (C, C)
    bq2 = bq.reshape(1, Cq)
    bk2 = bk.reshape(1, Cq)
    bv2 = bv.reshape(1, C)
    gamma1 = gamma.reshape(1)           # scalar -> SMEM

    TB = batch_tile if batch_tile is not None else _pick_batch_tile(B, N)
    assert B % TB == 0, "batch tile must divide batch"

    kernel = functools.partial(_attn_kernel,
                               inv_sqrt_c=1.0 / math.sqrt(float(C)))

    out_bcn = pl.pallas_call(
        kernel,
        out_shape=jax.ShapeDtypeStruct((B, C, N), x.dtype),
        grid_spec=pltpu.PrefetchScalarGridSpec(
            num_scalar_prefetch=0,
            grid=(B // TB,),
            in_specs=[
                pl.BlockSpec((TB, C, N), lambda b: (b, 0, 0)),   # x (B, C, N)
                pl.BlockSpec((C, Cq), lambda b: (0, 0)),         # Wq^T
                pl.BlockSpec((C, Cq), lambda b: (0, 0)),         # Wk^T
                pl.BlockSpec((C, C), lambda b: (0, 0)),          # Wv^T
                pl.BlockSpec((1, Cq), lambda b: (0, 0)),         # bq
                pl.BlockSpec((1, Cq), lambda b: (0, 0)),         # bk
                pl.BlockSpec((1, C), lambda b: (0, 0)),          # bv
                pl.BlockSpec(memory_space=pltpu.MemorySpace.SMEM),  # gamma
            ],
            out_specs=pl.BlockSpec((TB, C, N), lambda b: (b, 0, 0)),
        ),
        compiler_params=pltpu.CompilerParams(
            dimension_semantics=("parallel",)),
    )(x_bcn, wq_t, wk_t, wv_t, bq2, bk2, bv2, gamma1)

    # (B, C, N) -> NCHW is a free reshape (no transpose).
    return out_bcn.reshape(B, C, W, H)


def _reference(x, wq, bq, wk, bk, wv, bv, gamma):
    """Pure-JAX mirror of the PyTorch forward for verification."""
    B, C, W, H = x.shape
    N = W * H
    Cq = wq.shape[0]
    xf = x.reshape(B, C, N)                                    # (B, C, N)
    q = jnp.einsum('oc,bcn->bon', wq.reshape(Cq, C), xf) + bq[None, :, None]
    k = jnp.einsum('oc,bcn->bon', wk.reshape(Cq, C), xf) + bk[None, :, None]
    v = jnp.einsum('oc,bcn->bon', wv.reshape(C, C), xf) + bv[None, :, None]
    energy = jnp.einsum('bci,bcj->bij', q, k) / jnp.sqrt(jnp.float32(C))
    att = jax.nn.softmax(energy, axis=-1)
    out = jnp.einsum('bcj,bij->bci', v, att)                   # (B, C, N)
    out = out.reshape(B, C, W, H)
    return gamma * out + x


if __name__ == "__main__":
    B, C, W, H = 2, 32, 8, 8
    n_heads = 4
    Cq = C // n_heads

    key = jax.random.PRNGKey(0)
    kx, kwq, kbq, kwk, kbk, kwv, kbv, kg = jax.random.split(key, 8)

    x = jax.random.normal(kx, (B, C, W, H), dtype=jnp.float32)

    # Conv2d(1x1) parameter shapes per the module's __init__ (deterministic init).
    wq = jax.random.normal(kwq, (Cq, C, 1, 1), dtype=jnp.float32) * 0.1
    bq = jax.random.normal(kbq, (Cq,), dtype=jnp.float32) * 0.1
    wk = jax.random.normal(kwk, (Cq, C, 1, 1), dtype=jnp.float32) * 0.1
    bk = jax.random.normal(kbk, (Cq,), dtype=jnp.float32) * 0.1
    wv = jax.random.normal(kwv, (C, C, 1, 1), dtype=jnp.float32) * 0.1
    bv = jax.random.normal(kbv, (C,), dtype=jnp.float32) * 0.1
    # nn.Parameter(torch.zeros(1)) -> shape (1,); nonzero deterministic value so
    # the attention path is exercised in the output.
    gamma = jax.random.normal(kg, (1,), dtype=jnp.float32) * 0.5

    out = cnn_self_attention(x, wq, bq, wk, bk, wv, bv, gamma, n_heads=n_heads)
    out = jax.block_until_ready(out)

    ref = _reference(x, wq, bq, wk, bk, wv, bv, gamma)
    assert out.shape == (B, C, W, H)
    # Slightly looser tolerance than before because the softmax normalization
    # uses the EUP approximate reciprocal (per perf review).
    assert jnp.allclose(out, ref, atol=2e-3, rtol=2e-3), "mismatch vs reference"

    print("KERNEL_OK")
</pallas_src>

<mosaic_0001>
module attributes {stable_mosaic.version = 11 : i64} {
  func.func @_attn_kernel(%arg0: i32, %arg1: memref<2x32x64xf32, #tpu.memory_space<vmem>>, %arg2: memref<32x8xf32, #tpu.memory_space<vmem>>, %arg3: memref<32x8xf32, #tpu.memory_space<vmem>>, %arg4: memref<32x32xf32, #tpu.memory_space<vmem>>, %arg5: memref<1x8xf32, #tpu.memory_space<vmem>>, %arg6: memref<1x8xf32, #tpu.memory_space<vmem>>, %arg7: memref<1x32xf32, #tpu.memory_space<vmem>>, %arg8: memref<1xf32, #tpu.memory_space<smem>>, %arg9: memref<2x32x64xf32, #tpu.memory_space<vmem>>) attributes {dimension_semantics = [#tpu.dimension_semantics<parallel>], iteration_bounds = array<i64: 1>, scalar_prefetch = 0 : i64, scratch_operands = 0 : i64, tpu.core_type = #tpu.core_type<tc>, window_params = [{transform_indices = @transform_0, window_bounds = array<i64: 2, 32, 64>}, {pipeline_mode = #tpu.pipeline_mode<synchronous>, transform_indices = @transform_1, window_bounds = array<i64: 32, 8>}, {pipeline_mode = #tpu.pipeline_mode<synchronous>, transform_indices = @transform_2, window_bounds = array<i64: 32, 8>}, {pipeline_mode = #tpu.pipeline_mode<synchronous>, transform_indices = @transform_3, window_bounds = array<i64: 32, 32>}, {pipeline_mode = #tpu.pipeline_mode<synchronous>, transform_indices = @transform_4, window_bounds = array<i64: 1, 8>}, {pipeline_mode = #tpu.pipeline_mode<synchronous>, transform_indices = @transform_5, window_bounds = array<i64: 1, 8>}, {pipeline_mode = #tpu.pipeline_mode<synchronous>, transform_indices = @transform_6, window_bounds = array<i64: 1, 32>}, {transform_indices = @transform_7, window_bounds = array<i64: 1>}, {transform_indices = @transform_8, window_bounds = array<i64: 2, 32, 64>}]} {
    %c0 = arith.constant 0 : index
    %c0_0 = arith.constant 0 : index
    %c0_1 = arith.constant 0 : index
    %0 = vector.load %arg1[%c0, %c0_0, %c0_1] : memref<2x32x64xf32, #tpu.memory_space<vmem>>, vector<2x32x64xf32>
    %1 = tpu.transpose %0, [0, 2, 1] : vector<2x32x64xf32> -> vector<2x64x32xf32>
    %2 = vector.shape_cast %1 : vector<2x64x32xf32> to vector<128x32xf32>
    %c0_2 = arith.constant 0 : index
    %c0_3 = arith.constant 0 : index
    %3 = vector.load %arg2[%c0_2, %c0_3] : memref<32x8xf32, #tpu.memory_space<vmem>>, vector<32x8xf32>
    %cst = arith.constant dense<0.000000e+00> : vector<128x8xf32>
    %4 = tpu.matmul %2, %3, %cst {dimension_numbers = #tpu.dot_dimension_numbers<[1], [0], [0], [1], [0, 0, 1, 1], [], []>} : vector<128x32xf32>, vector<32x8xf32>, vector<128x8xf32> -> vector<128x8xf32>
    %c0_4 = arith.constant 0 : index
    %c0_5 = arith.constant 0 : index
    %5 = vector.load %arg5[%c0_4, %c0_5] : memref<1x8xf32, #tpu.memory_space<vmem>>, vector<1x8xf32>
    %6 = vector.broadcast %5 : vector<1x8xf32> to vector<128x8xf32>
    %7 = arith.addf %4, %6 : vector<128x8xf32>
    %cst_6 = arith.constant 0.176776692 : f32
    %8 = vector.broadcast %cst_6 : f32 to vector<128x8xf32>
    %9 = arith.mulf %7, %8 : vector<128x8xf32>
    %c0_7 = arith.constant 0 : index
    %c0_8 = arith.constant 0 : index
    %10 = vector.load %arg3[%c0_7, %c0_8] : memref<32x8xf32, #tpu.memory_space<vmem>>, vector<32x8xf32>
    %cst_9 = arith.constant dense<0.000000e+00> : vector<128x8xf32>
    %11 = tpu.matmul %2, %10, %cst_9 {dimension_numbers = #tpu.dot_dimension_numbers<[1], [0], [0], [1], [0, 0, 1, 1], [], []>} : vector<128x32xf32>, vector<32x8xf32>, vector<128x8xf32> -> vector<128x8xf32>
    %c0_10 = arith.constant 0 : index
    %c0_11 = arith.constant 0 : index
    %12 = vector.load %arg6[%c0_10, %c0_11] : memref<1x8xf32, #tpu.memory_space<vmem>>, vector<1x8xf32>
    %13 = vector.broadcast %12 : vector<1x8xf32> to vector<128x8xf32>
    %14 = arith.addf %11, %13 : vector<128x8xf32>
    %c0_12 = arith.constant 0 : index
    %c0_13 = arith.constant 0 : index
    %15 = vector.load %arg4[%c0_12, %c0_13] : memref<32x32xf32, #tpu.memory_space<vmem>>, vector<32x32xf32>
    %cst_14 = arith.constant dense<0.000000e+00> : vector<128x32xf32>
    %16 = tpu.matmul %2, %15, %cst_14 {dimension_numbers = #tpu.dot_dimension_numbers<[1], [0], [0], [1], [0, 0, 1, 1], [], []>} : vector<128x32xf32>, vector<32x32xf32>, vector<128x32xf32> -> vector<128x32xf32>
    %c0_15 = arith.constant 0 : index
    %c0_16 = arith.constant 0 : index
    %17 = vector.load %arg7[%c0_15, %c0_16] : memref<1x32xf32, #tpu.memory_space<vmem>>, vector<1x32xf32>
    %18 = vector.broadcast %17 : vector<1x32xf32> to vector<128x32xf32>
    %19 = arith.addf %16, %18 : vector<128x32xf32>
    %20 = vector.shape_cast %9 : vector<128x8xf32> to vector<2x64x8xf32>
    %21 = vector.shape_cast %14 : vector<128x8xf32> to vector<2x64x8xf32>
    %22 = vector.shape_cast %19 : vector<128x32xf32> to vector<2x64x32xf32>
    "tpu.trace_start"() <{level = 10 : i32, message = "bnd,bmd->bnm"}> : () -> ()
    %cst_17 = arith.constant dense<0.000000e+00> : vector<2x64x64xf32>
    %23 = tpu.matmul %20, %21, %cst_17 {dimension_numbers = #tpu.dot_dimension_numbers<[2], [2], [1], [1], [0, 0, 0, 1, 1, 1], [0], [0]>} : vector<2x64x8xf32>, vector<2x64x8xf32>, vector<2x64x64xf32> -> vector<2x64x64xf32>
    "tpu.trace_stop"() : () -> ()
    %cst_18 = arith.constant dense<0xFF800000> : vector<2x64xf32>
    %24 = vector.multi_reduction <maximumf>, %23, %cst_18 [2] : vector<2x64x64xf32> to vector<2x64xf32>
    %25 = vector.shape_cast %24 : vector<2x64xf32> to vector<2x64x1xf32>
    %26 = vector.broadcast %25 : vector<2x64x1xf32> to vector<2x64x64xf32>
    %27 = arith.subf %23, %26 : vector<2x64x64xf32>
    %28 = math.exp %27 : vector<2x64x64xf32>
    %cst_19 = arith.constant dense<0.000000e+00> : vector<2x64xf32>
    %29 = vector.multi_reduction <add>, %28, %cst_19 [2] : vector<2x64x64xf32> to vector<2x64xf32>
    %30 = vector.shape_cast %29 : vector<2x64xf32> to vector<2x64x1xf32>
    %31 = tpu.reciprocal %30 {approx = true} : vector<2x64x1xf32> -> vector<2x64x1xf32>
    %32 = vector.broadcast %31 : vector<2x64x1xf32> to vector<2x64x64xf32>
    %33 = arith.mulf %28, %32 : vector<2x64x64xf32>
    "tpu.trace_start"() <{level = 10 : i32, message = "bnm,bmc->bnc"}> : () -> ()
    %cst_20 = arith.constant dense<0.000000e+00> : vector<2x64x32xf32>
    %34 = tpu.matmul %33, %22, %cst_20 {dimension_numbers = #tpu.dot_dimension_numbers<[2], [1], [1], [2], [0, 0, 0, 1, 1, 2], [0], [0]>} : vector<2x64x64xf32>, vector<2x64x32xf32>, vector<2x64x32xf32> -> vector<2x64x32xf32>
    "tpu.trace_stop"() : () -> ()
    %35 = tpu.transpose %34, [0, 2, 1] : vector<2x64x32xf32> -> vector<2x32x64xf32>
    %c0_21 = arith.constant 0 : index
    %36 = memref.load %arg8[%c0_21] : memref<1xf32, #tpu.memory_space<smem>>
    %37 = vector.broadcast %36 : f32 to vector<2x32x64xf32>
    %38 = arith.mulf %37, %35 : vector<2x32x64xf32>
    %39 = arith.addf %38, %0 : vector<2x32x64xf32>
    %c0_22 = arith.constant 0 : index
    %c0_23 = arith.constant 0 : index
    %c0_24 = arith.constant 0 : index
    %40 = vector.load %arg9[%c0_22, %c0_23, %c0_24] : memref<2x32x64xf32, #tpu.memory_space<vmem>>, vector<2x32x64xf32>
    tpu.vector_store %arg9[%c0_22, %c0_23, %c0_24], %39 {strides = array<i32>} : memref<2x32x64xf32, #tpu.memory_space<vmem>>, vector<2x32x64xf32>,
    return
  }
  func.func @transform_0(%arg0: i32) -> (i32, i32, i32) {
    %c0_i32 = arith.constant 0 : i32
    %c0_i32_0 = arith.constant 0 : i32
    %c0_i32_1 = arith.constant 0 : i32
    return %arg0, %c0_i32, %c0_i32_0 : i32, i32, i32
  }
  func.func @transform_1(%arg0: i32) -> (i32, i32) {
    %c0_i32 = arith.constant 0 : i32
    %c0_i32_0 = arith.constant 0 : i32
    %c0_i32_1 = arith.constant 0 : i32
    return %c0_i32, %c0_i32_0 : i32, i32
  }
  func.func @transform_2(%arg0: i32) -> (i32, i32) {
    %c0_i32 = arith.constant 0 : i32
    %c0_i32_0 = arith.constant 0 : i32
    %c0_i32_1 = arith.constant 0 : i32
    return %c0_i32, %c0_i32_0 : i32, i32
  }
  func.func @transform_3(%arg0: i32) -> (i32, i32) {
    %c0_i32 = arith.constant 0 : i32
    %c0_i32_0 = arith.constant 0 : i32
    %c0_i32_1 = arith.constant 0 : i32
    return %c0_i32, %c0_i32_0 : i32, i32
  }
  func.func @transform_4(%arg0: i32) -> (i32, i32) {
    %c0_i32 = arith.constant 0 : i32
    %c0_i32_0 = arith.constant 0 : i32
    %c0_i32_1 = arith.constant 0 : i32
    return %c0_i32, %c0_i32_0 : i32, i32
  }
  func.func @transform_5(%arg0: i32) -> (i32, i32) {
    %c0_i32 = arith.constant 0 : i32
    %c0_i32_0 = arith.constant 0 : i32
    %c0_i32_1 = arith.constant 0 : i32
    return %c0_i32, %c0_i32_0 : i32, i32
  }
  func.func @transform_6(%arg0: i32) -> (i32, i32) {
    %c0_i32 = arith.constant 0 : i32
    %c0_i32_0 = arith.constant 0 : i32
    %c0_i32_1 = arith.constant 0 : i32
    return %c0_i32, %c0_i32_0 : i32, i32
  }
  func.func @transform_7(%arg0: i32) -> i32 {
    %c0_i32 = arith.constant 0 : i32
    %c0_i32_0 = arith.constant 0 : i32
    return %c0_i32 : i32
  }
  func.func @transform_8(%arg0: i32) -> (i32, i32, i32) {
    %c0_i32 = arith.constant 0 : i32
    %c0_i32_0 = arith.constant 0 : i32
    %c0_i32_1 = arith.constant 0 : i32
    return %arg0, %c0_i32, %c0_i32_0 : i32, i32, i32
  }
}

</mosaic_0001>

<llo_original>
// kernel: tpu_custom_call.1
$region0: #{tpu_custom_call.1}
  #allocation0 [shape = 'u32[]', space=smem, size = 0x4, offset = 0x4, fixed_abs, tag = 'smem constant byte address 0x4 - core index']
  #allocation1 [shape = 'u32[144,128]{1,0:T(1,128)}', space=vmem, size = 0x12000, scoped, tag = 'internal scratch']
  #allocation2 [shape = 'f32[1]{0:T(128)S(6)}', space=smem, size = 0x200, scoped, tag = 'scoped memory for tpu_custom_call.1']
  %s0 = inlined_call_operand.vmem [shape: f32[2,32,64], index: 0, kind: input, shape index: {}]
  %s1 = inlined_call_operand.vmem [shape: f32[32,8], index: 1, kind: input, shape index: {}]
  %s2 = inlined_call_operand.vmem [shape: f32[32,8], index: 2, kind: input, shape index: {}]
  %s3 = inlined_call_operand.hbm [shape: f32[32,32], index: 3, kind: input, shape index: {}]
  %s4 = inlined_call_operand.vmem [shape: f32[1,8], index: 4, kind: input, shape index: {}]
  %s5 = inlined_call_operand.vmem [shape: f32[1,8], index: 5, kind: input, shape index: {}]
  %s6 = inlined_call_operand.vmem [shape: f32[1,32], index: 6, kind: input, shape index: {}]
  %s7 = inlined_call_operand.<no memory space> [shape: f32[1], index: 7, kind: input, shape index: {}]
  %s8 = inlined_call_operand.hbm [shape: f32[2,32,64], index: 8, kind: output, shape index: {}]
  %s9 = sld [smem:[#allocation0]]
  $region46: #{tpu_custom_call.1} parent=0
    _
  %s11 = ssub.s32 1, %s9
  %s12 = scalar_select 0, %s11, %s9
  %13 = sst [smem:[#allocation2]] %s7
  $region1: #{tpu_custom_call.1} parent=0
    #allocation3 [shape = 'u8[16384]{0}', space=vmem, size = 0x4000, scoped, tag = 'input window, operand 3, single buffered']
    #allocation4 [shape = 's32[1]{0}', space=sflag, size = 0x4, scoped, tag = 'scoped memory for tpu_custom_call.1']
    #allocation5 [shape = 's32[1]{0}', space=sflag, size = 0x4, scoped, tag = 'scoped memory for tpu_custom_call.1']
    #allocation6 [shape = 'u8[32768]{0}', space=vmem, size = 0x8000, scoped, tag = 'output window, operand 0, single buffered']
    %14 = vsyncpa [#allocation4], 0
    %15 = vsyncpa [#allocation5], 0
    // Predicated region
    $region2: #{tpu_custom_call.1} parent=1 // pred_check
      _
    $region3: #{tpu_custom_call.1} parent=1 // pred_check_branch
      %17 = sbr.rel (0) target = $region5
    $region4: #{tpu_custom_call.1} parent=1 // pred_region
      _
    $region5: #{tpu_custom_call.1} parent=1 // pred_fallthru
      _
    // Predicated region
    $region6: #{tpu_custom_call.1} parent=1 // pred_check
      _
    $region7: #{tpu_custom_call.1} parent=1 // pred_check_branch
      %19 = sbr.rel (0) target = $region9
    $region8: #{tpu_custom_call.1} parent=1 // pred_region
      _
    $region9: #{tpu_custom_call.1} parent=1 // pred_fallthru
      _
    // Predicated region
    $region10: #{tpu_custom_call.1} parent=1 // pred_check
      _
    $region11: #{tpu_custom_call.1} parent=1 // pred_check_branch
      %21 = sbr.rel (0) target = $region13
    $region12: #{tpu_custom_call.1} parent=1 // pred_region
      _
    $region13: #{tpu_custom_call.1} parent=1 // pred_fallthru
      _
    // Predicated region
    $region14: #{tpu_custom_call.1} parent=1 // pred_check
      _
    $region15: #{tpu_custom_call.1} parent=1 // pred_check_branch
      %23 = sbr.rel (0) target = $region17
    $region16: #{tpu_custom_call.1} parent=1 // pred_region
      %s25 = ssub.s32 512, 512
      %26 = vsyncadd [#allocation4], %s25
      %s27 = sshll.u32 [#allocation3], 4
      %s28 = int_to_ptr.vmem [resolvable:$true] %s27
      %33 = dma.hbm_to_vmem [thread:$0]  %s3, 512, %s28, [#allocation4], 128, 128, 8
    $region17: #{tpu_custom_call.1} parent=1 // pred_fallthru
      _
    // Predicated region
    $region18: #{tpu_custom_call.1} parent=1 // pred_check
      _
    $region19: #{tpu_custom_call.1} parent=1 // pred_check_branch
      %35 = sbr.rel (0) target = $region21
    $region20: #{tpu_custom_call.1} parent=1 // pred_region
      _
    $region21: #{tpu_custom_call.1} parent=1 // pred_fallthru
      _
    // Predicated region
    $region22: #{tpu_custom_call.1} parent=1 // pred_check
      _
    $region23: #{tpu_custom_call.1} parent=1 // pred_check_branch
      %37 = sbr.rel (0) target = $region25
    $region24: #{tpu_custom_call.1} parent=1 // pred_region
      _
    $region25: #{tpu_custom_call.1} parent=1 // pred_fallthru
      _
    // Predicated region
    $region26: #{tpu_custom_call.1} parent=1 // pred_check
      _
    $region27: #{tpu_custom_call.1} parent=1 // pred_check_branch
      %39 = sbr.rel (0) target = $region29
    $region28: #{tpu_custom_call.1} parent=1 // pred_region
      _
    $region29: #{tpu_custom_call.1} parent=1 // pred_fallthru
      _
    // Predicated region
    $region30: #{tpu_custom_call.1} parent=1 // pred_check
      _
    $region31: #{tpu_custom_call.1} parent=1 // pred_check_branch
      %41 = sbr.rel (0) target = $region33
    $region32: #{tpu_custom_call.1} parent=1 // pred_region
      _
    $region33: #{tpu_custom_call.1} parent=1 // pred_fallthru
      _
    // Predicated region
    $region34: #{tpu_custom_call.1} parent=1 // pred_check
      _
    $region35: #{tpu_custom_call.1} parent=1 // pred_check_branch
      %43 = sbr.rel (0) target = $region37
    $region36: #{tpu_custom_call.1} parent=1 // pred_region
      %44 = dma.done [#allocation4], 512
    $region37: #{tpu_custom_call.1} parent=1 // pred_fallthru
      _
    %v45 = vld [vmem:[%s0] sm:$0xff]
    %v46 = vld [vmem:[%s0 + $0x8] sm:$0xff]
    %v47 = vld [vmem:[%s0 + $0x10] sm:$0xff]
    %v48 = vld [vmem:[%s0 + $0x18] sm:$0xff]
    %v49 = vld [vmem:[%s0 + $0x20] sm:$0xff]
    %v50 = vld [vmem:[%s0 + $0x28] sm:$0xff]
    %v51 = vld [vmem:[%s0 + $0x30] sm:$0xff]
    %v52 = vld [vmem:[%s0 + $0x38] sm:$0xff]
    %53 = vxpose.xlu0.b32.start [1/16] %v45, 128
    %54 = vxpose.xlu0.b32.cont [2/16] %v46, 128
    %55 = vxpose.xlu0.b32.cont [3/16] %v47, 128
    %56 = vxpose.xlu0.b32.cont [4/16] %v48, 128
    %57 = vxpose.xlu0.b32.cont [5/16] 0.0, 128
    %58 = vxpose.xlu0.b32.cont [6/16] 0.0, 128
    %59 = vxpose.xlu0.b32.cont [7/16] 0.0, 128
    %60 = vxpose.xlu0.b32.cont [8/16] 0.0, 128
    %61 = vxpose.xlu0.b32.cont [9/16] 0.0, 128
    %62 = vxpose.xlu0.b32.cont [10/16] 0.0, 128
    %63 = vxpose.xlu0.b32.cont [11/16] 0.0, 128
    %64 = vxpose.xlu0.b32.cont [12/16] 0.0, 128
    %65 = vxpose.xlu0.b32.cont [13/16] 0.0, 128
    %66 = vxpose.xlu0.b32.cont [14/16] 0.0, 128
    %67 = vxpose.xlu0.b32.cont [15/16] 0.0, 128
    %68 = vxpose.xlu0.b32.end [16/16] 0.0, 128
    %v69 = vpop.trf.xlu0
    %v70 = vpop.trf.xlu0
    %v71 = vpop.trf.xlu0
    %v72 = vpop.trf.xlu0
    %v73 = vpop.trf.xlu0
    %v74 = vpop.trf.xlu0
    %v75 = vpop.trf.xlu0
    %v76 = vpop.trf.xlu0
    %v77 = vpop.trf.xlu0
    %v78 = vpop.trf.xlu0
    %v79 = vpop.trf.xlu0
    %v80 = vpop.trf.xlu0
    %v81 = vpop.trf.xlu0
    %v82 = vpop.trf.xlu0
    %v83 = vpop.trf.xlu0
    %v84 = vpop.trf.xlu0
    %85 = vxpose.xlu0.b32.start [1/16] %v49, 128
    %86 = vxpose.xlu0.b32.cont [2/16] %v50, 128
    %87 = vxpose.xlu0.b32.cont [3/16] %v51, 128
    %88 = vxpose.xlu0.b32.cont [4/16] %v52, 128
    %89 = vxpose.xlu0.b32.cont [5/16] 0.0, 128
    %90 = vxpose.xlu0.b32.cont [6/16] 0.0, 128
    %91 = vxpose.xlu0.b32.cont [7/16] 0.0, 128
    %92 = vxpose.xlu0.b32.cont [8/16] 0.0, 128
    %93 = vxpose.xlu0.b32.cont [9/16] 0.0, 128
    %94 = vxpose.xlu0.b32.cont [10/16] 0.0, 128
    %95 = vxpose.xlu0.b32.cont [11/16] 0.0, 128
    %96 = vxpose.xlu0.b32.cont [12/16] 0.0, 128
    %97 = vxpose.xlu0.b32.cont [13/16] 0.0, 128
    %98 = vxpose.xlu0.b32.cont [14/16] 0.0, 128
    %99 = vxpose.xlu0.b32.cont [15/16] 0.0, 128
    %100 = vxpose.xlu0.b32.end [16/16] 0.0, 128
    %v101 = vpop.trf.xlu0
    %v102 = vpop.trf.xlu0
    %v103 = vpop.trf.xlu0
    %v104 = vpop.trf.xlu0
    %v105 = vpop.trf.xlu0
    %v106 = vpop.trf.xlu0
    %v107 = vpop.trf.xlu0
    %v108 = vpop.trf.xlu0
    %v109 = vpop.trf.xlu0
    %v110 = vpop.trf.xlu0
    %v111 = vpop.trf.xlu0
    %v112 = vpop.trf.xlu0
    %v113 = vpop.trf.xlu0
    %v114 = vpop.trf.xlu0
    %v115 = vpop.trf.xlu0
    %v116 = vpop.trf.xlu0
    %v117 = vld [vmem:[%s1] sm:$0xff]
    %v118 = vld [vmem:[%s1 + $0x8] sm:$0xff]
    %v119 = vld [vmem:[%s1 + $0x10] sm:$0xff]
    %v120 = vld [vmem:[%s1 + $0x18] sm:$0xff]
    %v121 = vld [vmem:[%s4] sm:$0x1]
    %v123 = vlaneseq
    %v124 = vshrl.u32 %v123, 7
    %v125 = vsub.s32 0, %v124
    %v126 = vrot.slane %v121, %v125
    %vm128 = vcmask 261120
    %v130 = vsel %vm128, %v69, 0
    %v133 = vsel %vm128, %v70, 0
    %v136 = vsel %vm128, %v71, 0
    %v139 = vsel %vm128, %v72, 0
    %v142 = vsel %vm128, %v73, 0
    %v145 = vsel %vm128, %v74, 0
    %v148 = vsel %vm128, %v75, 0
    %v151 = vsel %vm128, %v76, 0
    %v154 = vsel %vm128, %v101, 0
    %v157 = vsel %vm128, %v102, 0
    %v160 = vsel %vm128, %v103, 0
    %v163 = vsel %vm128, %v104, 0
    %v166 = vsel %vm128, %v105, 0
    %v169 = vsel %vm128, %v106, 0
    %v172 = vsel %vm128, %v107, 0
    %v175 = vsel %vm128, %v108, 0
    %177 = vmatprep.subr.mxu0 0.0
    %178 = vmatpush1.msra.mxu0 %v117
    %179 = vmatprep.subr.mxu0 0.0
    %180 = vmatpush1.msra.mxu0 %v118
    %181 = vmatprep.subr.mxu0 0.0
    %182 = vmatpush1.msra.mxu0 %v119
    %183 = vmatprep.subr.mxu0 0.0
    %184 = vmatpush1.msra.mxu0 %v120
    %185 = vmatprep.subr.mxu0 0.0
    %186 = vmatpush1.msra.mxu0 0.0
    %187 = vmatprep.subr.mxu0 0.0
    %188 = vmatpush1.msra.mxu0 0.0
    %189 = vmatprep.subr.mxu0 0.0
    %190 = vmatpush1.msra.mxu0 0.0
    %191 = vmatprep.subr.mxu0 0.0
    %192 = vmatpush1.msra.mxu0 0.0
    %193 = vmatprep.subr.mxu0 0.0
    %194 = vmatpush1.msra.mxu0 0.0
    %195 = vmatprep.subr.mxu0 0.0
    %196 = vmatpush1.msra.mxu0 0.0
    %197 = vmatprep.subr.mxu0 0.0
    %198 = vmatpush1.msra.mxu0 0.0
    %199 = vmatprep.subr.mxu0 0.0
    %200 = vmatpush1.msra.mxu0 0.0
    %201 = vmatprep.subr.mxu0 0.0
    %202 = vmatpush1.msra.mxu0 0.0
    %203 = vmatprep.subr.mxu0 0.0
    %204 = vmatpush1.msra.mxu0 0.0
    %205 = vmatprep.subr.mxu0 0.0
    %206 = vmatpush1.msra.mxu0 0.0
    %207 = vmatprep.subr.mxu0 0.0
    %208 = vmatpush1.msra.mxu0 0.0
    %209 = vmatprep.subr.mxu0 0.0
    %210 = vmatpush1.msra.mxu0 0.0
    %211 = vmatprep.subr.mxu0 0.0
    %212 = vmatpush1.msra.mxu0 0.0
    %213 = vmatprep.subr.mxu0 0.0
    %214 = vmatpush1.msra.mxu0 0.0
    %215 = vmatprep.subr.mxu0 0.0
    %216 = vmatpush1.msra.mxu0 0.0
    %217 = vmatprep.subr.mxu0 0.0
    %218 = vmatpush1.msra.mxu0 0.0
    %219 = vmatprep.subr.mxu0 0.0
    %220 = vmatpush1.msra.mxu0 0.0
    %221 = vmatprep.subr.mxu0 0.0
    %222 = vmatpush1.msra.mxu0 0.0
    %223 = vmatprep.subr.mxu0 0.0
    %224 = vmatpush1.msra.mxu0 0.0
    %225 = vmatprep.subr.mxu0 0.0
    %226 = vmatpush1.msra.mxu0 0.0
    %227 = vmatprep.subr.mxu0 0.0
    %228 = vmatpush1.msra.mxu0 0.0
    %229 = vmatprep.subr.mxu0 0.0
    %230 = vmatpush1.msra.mxu0 0.0
    %231 = vmatprep.subr.mxu0 0.0
    %232 = vmatpush1.msra.mxu0 0.0
    %233 = vmatprep.subr.mxu0 0.0
    %234 = vmatpush1.msra.mxu0 0.0
    %235 = vmatprep.subr.mxu0 0.0
    %236 = vmatpush1.msra.mxu0 0.0
    %237 = vmatprep.subr.mxu0 0.0
    %238 = vmatpush1.msra.mxu0 0.0
    %239 = vmatprep.subr.mxu0 0.0
    %240 = vmatpush1.msra.mxu0 0.0
    %241 = vmatprep.mubr.f32.mxu0 0.0
    %242 = vmatmul.mubr.f32.gmra.mrb[0].mxu0 %v130
    %v243 = vpop.f32.mrb[0].mxu0
    %v244 = vadd.f32 %v126, %v243
    %v245 = vpop.f32.mrb[0].mxu0
    %246 = vmatprep.mubr.f32.mxu0 0.0
    %247 = vmatmul.mubr.f32.gmra.mrb[0].mxu0 %v133
    %v248 = vpop.f32.mrb[0].mxu0
    %v249 = vadd.f32 %v126, %v248
    %v250 = vpop.f32.mrb[0].mxu0
    %251 = vmatprep.mubr.f32.mxu0 0.0
    %252 = vmatmul.mubr.f32.gmra.mrb[0].mxu0 %v136
    %v253 = vpop.f32.mrb[0].mxu0
    %v254 = vadd.f32 %v126, %v253
    %v255 = vpop.f32.mrb[0].mxu0
    %256 = vmatprep.mubr.f32.mxu0 0.0
    %257 = vmatmul.mubr.f32.gmra.mrb[0].mxu0 %v139
    %v258 = vpop.f32.mrb[0].mxu0
    %v259 = vadd.f32 %v126, %v258
    %v260 = vpop.f32.mrb[0].mxu0
    %261 = vmatprep.mubr.f32.mxu0 0.0
    %262 = vmatmul.mubr.f32.gmra.mrb[0].mxu0 %v142
    %v263 = vpop.f32.mrb[0].mxu0
    %v264 = vadd.f32 %v126, %v263
    %v265 = vpop.f32.mrb[0].mxu0
    %266 = vmatprep.mubr.f32.mxu0 0.0
    %267 = vmatmul.mubr.f32.gmra.mrb[0].mxu0 %v145
    %v268 = vpop.f32.mrb[0].mxu0
    %v269 = vadd.f32 %v126, %v268
    %v270 = vpop.f32.mrb[0].mxu0
    %271 = vmatprep.mubr.f32.mxu0 0.0
    %272 = vmatmul.mubr.f32.gmra.mrb[0].mxu0 %v148
    %v273 = vpop.f32.mrb[0].mxu0
    %v274 = vadd.f32 %v126, %v273
    %v275 = vpop.f32.mrb[0].mxu0
    %276 = vmatprep.mubr.f32.mxu0 0.0
    %277 = vmatmul.mubr.f32.gmra.mrb[0].mxu0 %v151
    %v278 = vpop.f32.mrb[0].mxu0
    %v279 = vadd.f32 %v126, %v278
    %v280 = vpop.f32.mrb[0].mxu0
    %281 = vmatprep.mubr.f32.mxu0 0.0
    %282 = vmatmul.mubr.f32.gmra.mrb[0].mxu0 %v154
    %v283 = vpop.f32.mrb[0].mxu0
    %v284 = vadd.f32 %v126, %v283
    %v285 = vpop.f32.mrb[0].mxu0
    %286 = vmatprep.mubr.f32.mxu0 0.0
    %287 = vmatmul.mubr.f32.gmra.mrb[0].mxu0 %v157
    %v288 = vpop.f32.mrb[0].mxu0
    %v289 = vadd.f32 %v126, %v288
    %v290 = vpop.f32.mrb[0].mxu0
    %291 = vmatprep.mubr.f32.mxu0 0.0
    %292 = vmatmul.mubr.f32.gmra.mrb[0].mxu0 %v160
    %v293 = vpop.f32.mrb[0].mxu0
    %v294 = vadd.f32 %v126, %v293
    %v295 = vpop.f32.mrb[0].mxu0
    %296 = vmatprep.mubr.f32.mxu0 0.0
    %297 = vmatmul.mubr.f32.gmra.mrb[0].mxu0 %v163
    %v298 = vpop.f32.mrb[0].mxu0
    %v299 = vadd.f32 %v126, %v298
    %v300 = vpop.f32.mrb[0].mxu0
    %301 = vmatprep.mubr.f32.mxu0 0.0
    %302 = vmatmul.mubr.f32.gmra.mrb[0].mxu0 %v166
    %v303 = vpop.f32.mrb[0].mxu0
    %v304 = vadd.f32 %v126, %v303
    %v305 = vpop.f32.mrb[0].mxu0
    %306 = vmatprep.mubr.f32.mxu0 0.0
    %307 = vmatmul.mubr.f32.gmra.mrb[0].mxu0 %v169
    %v308 = vpop.f32.mrb[0].mxu0
    %v309 = vadd.f32 %v126, %v308
    %v310 = vpop.f32.mrb[0].mxu0
    %311 = vmatprep.mubr.f32.mxu0 0.0
    %312 = vmatmul.mubr.f32.gmra.mrb[0].mxu0 %v172
    %v313 = vpop.f32.mrb[0].mxu0
    %v314 = vadd.f32 %v126, %v313
    %v315 = vpop.f32.mrb[0].mxu0
    %316 = vmatprep.mubr.f32.mxu0 0.0
    %317 = vmatmul.mubr.f32.gmra.mrb[0].mxu0 %v175
    %v318 = vpop.f32.mrb[0].mxu0
    %v319 = vadd.f32 %v126, %v318
    %v320 = vpop.f32.mrb[0].mxu0
    %321 = vdwg.mxu0
    %v322 = vmul.f32 %v244, 0.17677669
    %v323 = vmul.f32 %v249, 0.17677669
    %v324 = vmul.f32 %v254, 0.17677669
    %v325 = vmul.f32 %v259, 0.17677669
    %v326 = vmul.f32 %v264, 0.17677669
    %v327 = vmul.f32 %v269, 0.17677669
    %v328 = vmul.f32 %v274, 0.17677669
    %v329 = vmul.f32 %v279, 0.17677669
    %v330 = vmul.f32 %v284, 0.17677669
    %v331 = vmul.f32 %v289, 0.17677669
    %v332 = vmul.f32 %v294, 0.17677669
    %v333 = vmul.f32 %v299, 0.17677669
    %v334 = vmul.f32 %v304, 0.17677669
    %v335 = vmul.f32 %v309, 0.17677669
    %v336 = vmul.f32 %v314, 0.17677669
    %v337 = vmul.f32 %v319, 0.17677669
    %v338 = vld [vmem:[%s2] sm:$0xff]
    %v339 = vld [vmem:[%s2 + $0x8] sm:$0xff]
    %v340 = vld [vmem:[%s2 + $0x10] sm:$0xff]
    %v341 = vld [vmem:[%s2 + $0x18] sm:$0xff]
    %v342 = vld [vmem:[%s5] sm:$0x1]
    %v344 = vlaneseq
    %v345 = vshrl.u32 %v344, 7
    %v346 = vsub.s32 0, %v345
    %v347 = vrot.slane %v342, %v346
    %349 = vmatprep.subr.mxu0 0.0
    %350 = vmatpush1.msra.mxu0 %v338
    %351 = vmatprep.subr.mxu0 0.0
    %352 = vmatpush1.msra.mxu0 %v339
    %353 = vmatprep.subr.mxu0 0.0
    %354 = vmatpush1.msra.mxu0 %v340
    %355 = vmatprep.subr.mxu0 0.0
    %356 = vmatpush1.msra.mxu0 %v341
    %357 = vmatprep.subr.mxu0 0.0
    %358 = vmatpush1.msra.mxu0 0.0
    %359 = vmatprep.subr.mxu0 0.0
    %360 = vmatpush1.msra.mxu0 0.0
    %361 = vmatprep.subr.mxu0 0.0
    %362 = vmatpush1.msra.mxu0 0.0
    %363 = vmatprep.subr.mxu0 0.0
    %364 = vmatpush1.msra.mxu0 0.0
    %365 = vmatprep.subr.mxu0 0.0
    %366 = vmatpush1.msra.mxu0 0.0
    %367 = vmatprep.subr.mxu0 0.0
    %368 = vmatpush1.msra.mxu0 0.0
    %369 = vmatprep.subr.mxu0 0.0
    %370 = vmatpush1.msra.mxu0 0.0
    %371 = vmatprep.subr.mxu0 0.0
    %372 = vmatpush1.msra.mxu0 0.0
    %373 = vmatprep.subr.mxu0 0.0
    %374 = vmatpush1.msra.mxu0 0.0
    %375 = vmatprep.subr.mxu0 0.0
    %376 = vmatpush1.msra.mxu0 0.0
    %377 = vmatprep.subr.mxu0 0.0
    %378 = vmatpush1.msra.mxu0 0.0
    %379 = vmatprep.subr.mxu0 0.0
    %380 = vmatpush1.msra.mxu0 0.0
    %381 = vmatprep.subr.mxu0 0.0
    %382 = vmatpush1.msra.mxu0 0.0
    %383 = vmatprep.subr.mxu0 0.0
    %384 = vmatpush1.msra.mxu0 0.0
    %385 = vmatprep.subr.mxu0 0.0
    %386 = vmatpush1.msra.mxu0 0.0
    %387 = vmatprep.subr.mxu0 0.0
    %388 = vmatpush1.msra.mxu0 0.0
    %389 = vmatprep.subr.mxu0 0.0
    %390 = vmatpush1.msra.mxu0 0.0
    %391 = vmatprep.subr.mxu0 0.0
    %392 = vmatpush1.msra.mxu0 0.0
    %393 = vmatprep.subr.mxu0 0.0
    %394 = vmatpush1.msra.mxu0 0.0
    %395 = vmatprep.subr.mxu0 0.0
    %396 = vmatpush1.msra.mxu0 0.0
    %397 = vmatprep.subr.mxu0 0.0
    %398 = vmatpush1.msra.mxu0 0.0
    %399 = vmatprep.subr.mxu0 0.0
    %400 = vmatpush1.msra.mxu0 0.0
    %401 = vmatprep.subr.mxu0 0.0
    %402 = vmatpush1.msra.mxu0 0.0
    %403 = vmatprep.subr.mxu0 0.0
    %404 = vmatpush1.msra.mxu0 0.0
    %405 = vmatprep.subr.mxu0 0.0
    %406 = vmatpush1.msra.mxu0 0.0
    %407 = vmatprep.subr.mxu0 0.0
    %408 = vmatpush1.msra.mxu0 0.0
    %409 = vmatprep.subr.mxu0 0.0
    %410 = vmatpush1.msra.mxu0 0.0
    %411 = vmatprep.subr.mxu0 0.0
    %412 = vmatpush1.msra.mxu0 0.0
    %413 = vmatprep.mubr.f32.mxu0 0.0
    %414 = vmatmul.mubr.f32.gmra.mrb[0].mxu0 %v130
    %v415 = vpop.f32.mrb[0].mxu0
    %v416 = vadd.f32 %v347, %v415
    %v417 = vpop.f32.mrb[0].mxu0
    %418 = vmatprep.mubr.f32.mxu0 0.0
    %419 = vmatmul.mubr.f32.gmra.mrb[0].mxu0 %v133
    %v420 = vpop.f32.mrb[0].mxu0
    %v421 = vadd.f32 %v347, %v420
    %v422 = vpop.f32.mrb[0].mxu0
    %423 = vmatprep.mubr.f32.mxu0 0.0
    %424 = vmatmul.mubr.f32.gmra.mrb[0].mxu0 %v136
    %v425 = vpop.f32.mrb[0].mxu0
    %v426 = vadd.f32 %v347, %v425
    %v427 = vpop.f32.mrb[0].mxu0
    %428 = vmatprep.mubr.f32.mxu0 0.0
    %429 = vmatmul.mubr.f32.gmra.mrb[0].mxu0 %v139
    %v430 = vpop.f32.mrb[0].mxu0
    %v431 = vadd.f32 %v347, %v430
    %v432 = vpop.f32.mrb[0].mxu0
    %433 = vmatprep.mubr.f32.mxu0 0.0
    %434 = vmatmul.mubr.f32.gmra.mrb[0].mxu0 %v142
    %v435 = vpop.f32.mrb[0].mxu0
    %v436 = vadd.f32 %v347, %v435
    %v437 = vpop.f32.mrb[0].mxu0
    %438 = vmatprep.mubr.f32.mxu0 0.0
    %439 = vmatmul.mubr.f32.gmra.mrb[0].mxu0 %v145
    %v440 = vpop.f32.mrb[0].mxu0
    %v441 = vadd.f32 %v347, %v440
    %v442 = vpop.f32.mrb[0].mxu0
    %443 = vmatprep.mubr.f32.mxu0 0.0
    %444 = vmatmul.mubr.f32.gmra.mrb[0].mxu0 %v148
    %v445 = vpop.f32.mrb[0].mxu0
    %v446 = vadd.f32 %v347, %v445
    %v447 = vpop.f32.mrb[0].mxu0
    %448 = vmatprep.mubr.f32.mxu0 0.0
    %449 = vmatmul.mubr.f32.gmra.mrb[0].mxu0 %v151
    %v450 = vpop.f32.mrb[0].mxu0
    %v451 = vadd.f32 %v347, %v450
    %v452 = vpop.f32.mrb[0].mxu0
    %453 = vmatprep.mubr.f32.mxu0 0.0
    %454 = vmatmul.mubr.f32.gmra.mrb[0].mxu0 %v154
    %v455 = vpop.f32.mrb[0].mxu0
    %v456 = vadd.f32 %v347, %v455
    %v457 = vpop.f32.mrb[0].mxu0
    %458 = vmatprep.mubr.f32.mxu0 0.0
    %459 = vmatmul.mubr.f32.gmra.mrb[0].mxu0 %v157
    %v460 = vpop.f32.mrb[0].mxu0
    %v461 = vadd.f32 %v347, %v460
    %v462 = vpop.f32.mrb[0].mxu0
    %463 = vmatprep.mubr.f32.mxu0 0.0
    %464 = vmatmul.mubr.f32.gmra.mrb[0].mxu0 %v160
    %v465 = vpop.f32.mrb[0].mxu0
    %v466 = vadd.f32 %v347, %v465
    %v467 = vpop.f32.mrb[0].mxu0
    %468 = vmatprep.mubr.f32.mxu0 0.0
    %469 = vmatmul.mubr.f32.gmra.mrb[0].mxu0 %v163
    %v470 = vpop.f32.mrb[0].mxu0
    %v471 = vadd.f32 %v347, %v470
    %v472 = vpop.f32.mrb[0].mxu0
    %473 = vmatprep.mubr.f32.mxu0 0.0
    %474 = vmatmul.mubr.f32.gmra.mrb[0].mxu0 %v166
    %v475 = vpop.f32.mrb[0].mxu0
    %v476 = vadd.f32 %v347, %v475
    %v477 = vpop.f32.mrb[0].mxu0
    %478 = vmatprep.mubr.f32.mxu0 0.0
    %479 = vmatmul.mubr.f32.gmra.mrb[0].mxu0 %v169
    %v480 = vpop.f32.mrb[0].mxu0
    %v481 = vadd.f32 %v347, %v480
    %v482 = vpop.f32.mrb[0].mxu0
    %483 = vmatprep.mubr.f32.mxu0 0.0
    %484 = vmatmul.mubr.f32.gmra.mrb[0].mxu0 %v172
    %v485 = vpop.f32.mrb[0].mxu0
    %v486 = vadd.f32 %v347, %v485
    %v487 = vpop.f32.mrb[0].mxu0
    %488 = vmatprep.mubr.f32.mxu0 0.0
    %489 = vmatmul.mubr.f32.gmra.mrb[0].mxu0 %v175
    %v490 = vpop.f32.mrb[0].mxu0
    %v491 = vadd.f32 %v347, %v490
    %v492 = vpop.f32.mrb[0].mxu0
    %493 = vdwg.mxu0
    %v494 = vld [vmem:[#allocation3] sm:$0xff]
    %v495 = vld [vmem:[#allocation3 + $0x8] sm:$0xff]
    %v496 = vld [vmem:[#allocation3 + $0x10] sm:$0xff]
    %v497 = vld [vmem:[#allocation3 + $0x18] sm:$0xff]
    %v498 = vld [vmem:[%s6] sm:$0x1]
    %v500 = vlaneseq
    %v501 = vshrl.u32 %v500, 7
    %v502 = vsub.s32 0, %v501
    %v503 = vrot.slane %v498, %v502
    %505 = vmatprep.subr.mxu0 0.0
    %506 = vmatpush1.msra.mxu0 %v494
    %507 = vmatprep.subr.mxu0 0.0
    %508 = vmatpush1.msra.mxu0 %v495
    %509 = vmatprep.subr.mxu0 0.0
    %510 = vmatpush1.msra.mxu0 %v496
    %511 = vmatprep.subr.mxu0 0.0
    %512 = vmatpush1.msra.mxu0 %v497
    %513 = vmatprep.subr.mxu0 0.0
    %514 = vmatpush1.msra.mxu0 0.0
    %515 = vmatprep.subr.mxu0 0.0
    %516 = vmatpush1.msra.mxu0 0.0
    %517 = vmatprep.subr.mxu0 0.0
    %518 = vmatpush1.msra.mxu0 0.0
    %519 = vmatprep.subr.mxu0 0.0
    %520 = vmatpush1.msra.mxu0 0.0
    %521 = vmatprep.subr.mxu0 0.0
    %522 = vmatpush1.msra.mxu0 0.0
    %523 = vmatprep.subr.mxu0 0.0
    %524 = vmatpush1.msra.mxu0 0.0
    %525 = vmatprep.subr.mxu0 0.0
    %526 = vmatpush1.msra.mxu0 0.0
    %527 = vmatprep.subr.mxu0 0.0
    %528 = vmatpush1.msra.mxu0 0.0
    %529 = vmatprep.subr.mxu0 0.0
    %530 = vmatpush1.msra.mxu0 0.0
    %531 = vmatprep.subr.mxu0 0.0
    %532 = vmatpush1.msra.mxu0 0.0
    %533 = vmatprep.subr.mxu0 0.0
    %534 = vmatpush1.msra.mxu0 0.0
    %535 = vmatprep.subr.mxu0 0.0
    %536 = vmatpush1.msra.mxu0 0.0
    %537 = vmatprep.subr.mxu0 0.0
    %538 = vmatpush1.msra.mxu0 0.0
    %539 = vmatprep.subr.mxu0 0.0
    %540 = vmatpush1.msra.mxu0 0.0
    %541 = vmatprep.subr.mxu0 0.0
    %542 = vmatpush1.msra.mxu0 0.0
    %543 = vmatprep.subr.mxu0 0.0
    %544 = vmatpush1.msra.mxu0 0.0
    %545 = vmatprep.subr.mxu0 0.0
    %546 = vmatpush1.msra.mxu0 0.0
    %547 = vmatprep.subr.mxu0 0.0
    %548 = vmatpush1.msra.mxu0 0.0
    %549 = vmatprep.subr.mxu0 0.0
    %550 = vmatpush1.msra.mxu0 0.0
    %551 = vmatprep.subr.mxu0 0.0
    %552 = vmatpush1.msra.mxu0 0.0
    %553 = vmatprep.subr.mxu0 0.0
    %554 = vmatpush1.msra.mxu0 0.0
    %555 = vmatprep.subr.mxu0 0.0
    %556 = vmatpush1.msra.mxu0 0.0
    %557 = vmatprep.subr.mxu0 0.0
    %558 = vmatpush1.msra.mxu0 0.0
    %559 = vmatprep.subr.mxu0 0.0
    %560 = vmatpush1.msra.mxu0 0.0
    %561 = vmatprep.subr.mxu0 0.0
    %562 = vmatpush1.msra.mxu0 0.0
    %563 = vmatprep.subr.mxu0 0.0
    %564 = vmatpush1.msra.mxu0 0.0
    %565 = vmatprep.subr.mxu0 0.0
    %566 = vmatpush1.msra.mxu0 0.0
    %567 = vmatprep.subr.mxu0 0.0
    %568 = vmatpush1.msra.mxu0 0.0
    %569 = vmatprep.mubr.f32.mxu0 0.0
    %570 = vmatmul.mubr.f32.gmra.mrb[0].mxu0 %v130
    %v571 = vpop.f32.mrb[0].mxu0
    %v572 = vadd.f32 %v503, %v571
    %v573 = vpop.f32.mrb[0].mxu0
    %574 = vmatprep.mubr.f32.mxu0 0.0
    %575 = vmatmul.mubr.f32.gmra.mrb[0].mxu0 %v133
    %v576 = vpop.f32.mrb[0].mxu0
    %v577 = vadd.f32 %v503, %v576
    %v578 = vpop.f32.mrb[0].mxu0
    %579 = vmatprep.mubr.f32.mxu0 0.0
    %580 = vmatmul.mubr.f32.gmra.mrb[0].mxu0 %v136
    %v581 = vpop.f32.mrb[0].mxu0
    %v582 = vadd.f32 %v503, %v581
    %v583 = vpop.f32.mrb[0].mxu0
    %584 = vmatprep.mubr.f32.mxu0 0.0
    %585 = vmatmul.mubr.f32.gmra.mrb[0].mxu0 %v139
    %v586 = vpop.f32.mrb[0].mxu0
    %v587 = vadd.f32 %v503, %v586
    %v588 = vpop.f32.mrb[0].mxu0
    %589 = vmatprep.mubr.f32.mxu0 0.0
    %590 = vmatmul.mubr.f32.gmra.mrb[0].mxu0 %v142
    %v591 = vpop.f32.mrb[0].mxu0
    %v592 = vadd.f32 %v503, %v591
    %v593 = vpop.f32.mrb[0].mxu0
    %594 = vmatprep.mubr.f32.mxu0 0.0
    %595 = vmatmul.mubr.f32.gmra.mrb[0].mxu0 %v145
    %v596 = vpop.f32.mrb[0].mxu0
    %v597 = vadd.f32 %v503, %v596
    %v598 = vpop.f32.mrb[0].mxu0
    %599 = vmatprep.mubr.f32.mxu0 0.0
    %600 = vmatmul.mubr.f32.gmra.mrb[0].mxu0 %v148
    %v601 = vpop.f32.mrb[0].mxu0
    %v602 = vadd.f32 %v503, %v601
    %v603 = vpop.f32.mrb[0].mxu0
    %604 = vmatprep.mubr.f32.mxu0 0.0
    %605 = vmatmul.mubr.f32.gmra.mrb[0].mxu0 %v151
    %v606 = vpop.f32.mrb[0].mxu0
    %v607 = vadd.f32 %v503, %v606
    %v608 = vpop.f32.mrb[0].mxu0
    %609 = vmatprep.mubr.f32.mxu0 0.0
    %610 = vmatmul.mubr.f32.gmra.mrb[0].mxu0 %v154
    %v611 = vpop.f32.mrb[0].mxu0
    %v612 = vadd.f32 %v503, %v611
    %v613 = vpop.f32.mrb[0].mxu0
    %614 = vmatprep.mubr.f32.mxu0 0.0
    %615 = vmatmul.mubr.f32.gmra.mrb[0].mxu0 %v157
    %v616 = vpop.f32.mrb[0].mxu0
    %v617 = vadd.f32 %v503, %v616
    %v618 = vpop.f32.mrb[0].mxu0
    %619 = vmatprep.mubr.f32.mxu0 0.0
    %620 = vmatmul.mubr.f32.gmra.mrb[0].mxu0 %v160
    %v621 = vpop.f32.mrb[0].mxu0
    %v622 = vadd.f32 %v503, %v621
    %v623 = vpop.f32.mrb[0].mxu0
    %624 = vmatprep.mubr.f32.mxu0 0.0
    %625 = vmatmul.mubr.f32.gmra.mrb[0].mxu0 %v163
    %v626 = vpop.f32.mrb[0].mxu0
    %v627 = vadd.f32 %v503, %v626
    %v628 = vpop.f32.mrb[0].mxu0
    %629 = vmatprep.mubr.f32.mxu0 0.0
    %630 = vmatmul.mubr.f32.gmra.mrb[0].mxu0 %v166
    %v631 = vpop.f32.mrb[0].mxu0
    %v632 = vadd.f32 %v503, %v631
    %v633 = vpop.f32.mrb[0].mxu0
    %634 = vmatprep.mubr.f32.mxu0 0.0
    %635 = vmatmul.mubr.f32.gmra.mrb[0].mxu0 %v169
    %v636 = vpop.f32.mrb[0].mxu0
    %v637 = vadd.f32 %v503, %v636
    %v638 = vpop.f32.mrb[0].mxu0
    %639 = vmatprep.mubr.f32.mxu0 0.0
    %640 = vmatmul.mubr.f32.gmra.mrb[0].mxu0 %v172
    %v641 = vpop.f32.mrb[0].mxu0
    %v642 = vadd.f32 %v503, %v641
    %v643 = vpop.f32.mrb[0].mxu0
    %644 = vmatprep.mubr.f32.mxu0 0.0
    %645 = vmatmul.mubr.f32.gmra.mrb[0].mxu0 %v175
    %v646 = vpop.f32.mrb[0].mxu0
    %v647 = vadd.f32 %v503, %v646
    %v648 = vpop.f32.mrb[0].mxu0
    %649 = vdwg.mxu0
    %vm650 = vcmask 64512
    %v652 = vsel %vm650, %v322, 0
    %v655 = vsel %vm650, %v323, 0
    %v658 = vsel %vm650, %v324, 0
    %v661 = vsel %vm650, %v325, 0
    %v664 = vsel %vm650, %v326, 0
    %v667 = vsel %vm650, %v327, 0
    %v670 = vsel %vm650, %v328, 0
    %v673 = vsel %vm650, %v329, 0
    %v676 = vsel %vm650, %v416, 0
    %v679 = vsel %vm650, %v421, 0
    %v682 = vsel %vm650, %v426, 0
    %v685 = vsel %vm650, %v431, 0
    %v688 = vsel %vm650, %v436, 0
    %v691 = vsel %vm650, %v441, 0
    %v694 = vsel %vm650, %v446, 0
    %v697 = vsel %vm650, %v451, 0
    %699 = vmatprep.subr.mxu0 0.0
    %700 = vmatpush1.xpose.msra.mxu0 %v676
    %701 = vmatprep.subr.mxu0 0.0
    %702 = vmatpush1.xpose.msra.mxu0 %v679
    %703 = vmatprep.subr.mxu0 0.0
    %704 = vmatpush1.xpose.msra.mxu0 %v682
    %705 = vmatprep.subr.mxu0 0.0
    %706 = vmatpush1.xpose.msra.mxu0 %v685
    %707 = vmatprep.subr.mxu0 0.0
    %708 = vmatpush1.xpose.msra.mxu0 %v688
    %709 = vmatprep.subr.mxu0 0.0
    %710 = vmatpush1.xpose.msra.mxu0 %v691
    %711 = vmatprep.subr.mxu0 0.0
    %712 = vmatpush1.xpose.msra.mxu0 %v694
    %713 = vmatprep.subr.mxu0 0.0
    %714 = vmatpush1.xpose.msra.mxu0 %v697
    %715 = vmatprep.subr.mxu0 0.0
    %716 = vmatpush1.xpose.msra.mxu0 0.0
    %717 = vmatprep.subr.mxu0 0.0
    %718 = vmatpush1.xpose.msra.mxu0 0.0
    %719 = vmatprep.subr.mxu0 0.0
    %720 = vmatpush1.xpose.msra.mxu0 0.0
    %721 = vmatprep.subr.mxu0 0.0
    %722 = vmatpush1.xpose.msra.mxu0 0.0
    %723 = vmatprep.subr.mxu0 0.0
    %724 = vmatpush1.xpose.msra.mxu0 0.0
    %725 = vmatprep.subr.mxu0 0.0
    %726 = vmatpush1.xpose.msra.mxu0 0.0
    %727 = vmatprep.subr.mxu0 0.0
    %728 = vmatpush1.xpose.msra.mxu0 0.0
    %729 = vmatprep.subr.mxu0 0.0
    %730 = vmatpush1.xpose.msra.mxu0 0.0
    %731 = vmatprep.subr.mxu0 0.0
    %732 = vmatpush1.xpose.msra.mxu0 0.0
    %733 = vmatprep.subr.mxu0 0.0
    %734 = vmatpush1.xpose.msra.mxu0 0.0
    %735 = vmatprep.subr.mxu0 0.0
    %736 = vmatpush1.xpose.msra.mxu0 0.0
    %737 = vmatprep.subr.mxu0 0.0
    %738 = vmatpush1.xpose.msra.mxu0 0.0
    %739 = vmatprep.subr.mxu0 0.0
    %740 = vmatpush1.xpose.msra.mxu0 0.0
    %741 = vmatprep.subr.mxu0 0.0
    %742 = vmatpush1.xpose.msra.mxu0 0.0
    %743 = vmatprep.subr.mxu0 0.0
    %744 = vmatpush1.xpose.msra.mxu0 0.0
    %745 = vmatprep.subr.mxu0 0.0
    %746 = vmatpush1.xpose.msra.mxu0 0.0
    %747 = vmatprep.subr.mxu0 0.0
    %748 = vmatpush1.xpose.msra.mxu0 0.0
    %749 = vmatprep.subr.mxu0 0.0
    %750 = vmatpush1.xpose.msra.mxu0 0.0
    %751 = vmatprep.subr.mxu0 0.0
    %752 = vmatpush1.xpose.msra.mxu0 0.0
    %753 = vmatprep.subr.mxu0 0.0
    %754 = vmatpush1.xpose.msra.mxu0 0.0
    %755 = vmatprep.subr.mxu0 0.0
    %756 = vmatpush1.xpose.msra.mxu0 0.0
    %757 = vmatprep.subr.mxu0 0.0
    %758 = vmatpush1.xpose.msra.mxu0 0.0
    %759 = vmatprep.subr.mxu0 0.0
    %760 = vmatpush1.xpose.msra.mxu0 0.0
    %761 = vmatprep.subr.mxu0 0.0
    %762 = vmatpush1.xpose.msra.mxu0 0.0
    %763 = vmatprep.mubr.f32.mxu0 0.0
    %764 = vmatmul.mubr.f32.gmra.mrb[0].mxu0 %v652
    %v765 = vpop.f32.mrb[0].mxu0
    %v766 = vadd.f32 0.0, %v765
    %v767 = vpop.f32.mrb[0].mxu0
    %768 = vmatprep.mubr.f32.mxu0 0.0
    %769 = vmatmul.mubr.f32.gmra.mrb[0].mxu0 %v655
    %v770 = vpop.f32.mrb[0].mxu0
    %v771 = vadd.f32 0.0, %v770
    %v772 = vpop.f32.mrb[0].mxu0
    %773 = vmatprep.mubr.f32.mxu0 0.0
    %774 = vmatmul.mubr.f32.gmra.mrb[0].mxu0 %v658
    %v775 = vpop.f32.mrb[0].mxu0
    %v776 = vadd.f32 0.0, %v775
    %v777 = vpop.f32.mrb[0].mxu0
    %778 = vmatprep.mubr.f32.mxu0 0.0
    %779 = vmatmul.mubr.f32.gmra.mrb[0].mxu0 %v661
    %v780 = vpop.f32.mrb[0].mxu0
    %v781 = vadd.f32 0.0, %v780
    %v782 = vpop.f32.mrb[0].mxu0
    %783 = vmatprep.mubr.f32.mxu0 0.0
    %784 = vmatmul.mubr.f32.gmra.mrb[0].mxu0 %v664
    %v785 = vpop.f32.mrb[0].mxu0
    %v786 = vadd.f32 0.0, %v785
    %v787 = vpop.f32.mrb[0].mxu0
    %788 = vmatprep.mubr.f32.mxu0 0.0
    %789 = vmatmul.mubr.f32.gmra.mrb[0].mxu0 %v667
    %v790 = vpop.f32.mrb[0].mxu0
    %v791 = vadd.f32 0.0, %v790
    %v792 = vpop.f32.mrb[0].mxu0
    %793 = vmatprep.mubr.f32.mxu0 0.0
    %794 = vmatmul.mubr.f32.gmra.mrb[0].mxu0 %v670
    %v795 = vpop.f32.mrb[0].mxu0
    %v796 = vadd.f32 0.0, %v795
    %v797 = vpop.f32.mrb[0].mxu0
    %798 = vmatprep.mubr.f32.mxu0 0.0
    %799 = vmatmul.mubr.f32.gmra.mrb[0].mxu0 %v673
    %v800 = vpop.f32.mrb[0].mxu0
    %v801 = vadd.f32 0.0, %v800
    %v802 = vpop.f32.mrb[0].mxu0
    %803 = vdwg.mxu0
    %v805 = vsel %vm650, %v330, 0
    %v808 = vsel %vm650, %v331, 0
    %v811 = vsel %vm650, %v332, 0
    %v814 = vsel %vm650, %v333, 0
    %v817 = vsel %vm650, %v334, 0
    %v820 = vsel %vm650, %v335, 0
    %v823 = vsel %vm650, %v336, 0
    %v826 = vsel %vm650, %v337, 0
    %v829 = vsel %vm650, %v456, 0
    %v832 = vsel %vm650, %v461, 0
    %v835 = vsel %vm650, %v466, 0
    %v838 = vsel %vm650, %v471, 0
    %v841 = vsel %vm650, %v476, 0
    %v844 = vsel %vm650, %v481, 0
    %v847 = vsel %vm650, %v486, 0
    %v850 = vsel %vm650, %v491, 0
    %852 = vmatprep.subr.mxu0 0.0
    %853 = vmatpush1.xpose.msra.mxu0 %v829
    %854 = vmatprep.subr.mxu0 0.0
    %855 = vmatpush1.xpose.msra.mxu0 %v832
    %856 = vmatprep.subr.mxu0 0.0
    %857 = vmatpush1.xpose.msra.mxu0 %v835
    %858 = vmatprep.subr.mxu0 0.0
    %859 = vmatpush1.xpose.msra.mxu0 %v838
    %860 = vmatprep.subr.mxu0 0.0
    %861 = vmatpush1.xpose.msra.mxu0 %v841
    %862 = vmatprep.subr.mxu0 0.0
    %863 = vmatpush1.xpose.msra.mxu0 %v844
    %864 = vmatprep.subr.mxu0 0.0
    %865 = vmatpush1.xpose.msra.mxu0 %v847
    %866 = vmatprep.subr.mxu0 0.0
    %867 = vmatpush1.xpose.msra.mxu0 %v850
    %868 = vmatprep.subr.mxu0 0.0
    %869 = vmatpush1.xpose.msra.mxu0 0.0
    %870 = vmatprep.subr.mxu0 0.0
    %871 = vmatpush1.xpose.msra.mxu0 0.0
    %872 = vmatprep.subr.mxu0 0.0
    %873 = vmatpush1.xpose.msra.mxu0 0.0
    %874 = vmatprep.subr.mxu0 0.0
    %875 = vmatpush1.xpose.msra.mxu0 0.0
    %876 = vmatprep.subr.mxu0 0.0
    %877 = vmatpush1.xpose.msra.mxu0 0.0
    %878 = vmatprep.subr.mxu0 0.0
    %879 = vmatpush1.xpose.msra.mxu0 0.0
    %880 = vmatprep.subr.mxu0 0.0
    %881 = vmatpush1.xpose.msra.mxu0 0.0
    %882 = vmatprep.subr.mxu0 0.0
    %883 = vmatpush1.xpose.msra.mxu0 0.0
    %884 = vmatprep.subr.mxu0 0.0
    %885 = vmatpush1.xpose.msra.mxu0 0.0
    %886 = vmatprep.subr.mxu0 0.0
    %887 = vmatpush1.xpose.msra.mxu0 0.0
    %888 = vmatprep.subr.mxu0 0.0
    %889 = vmatpush1.xpose.msra.mxu0 0.0
    %890 = vmatprep.subr.mxu0 0.0
    %891 = vmatpush1.xpose.msra.mxu0 0.0
    %892 = vmatprep.subr.mxu0 0.0
    %893 = vmatpush1.xpose.msra.mxu0 0.0
    %894 = vmatprep.subr.mxu0 0.0
    %895 = vmatpush1.xpose.msra.mxu0 0.0
    %896 = vmatprep.subr.mxu0 0.0
    %897 = vmatpush1.xpose.msra.mxu0 0.0
    %898 = vmatprep.subr.mxu0 0.0
    %899 = vmatpush1.xpose.msra.mxu0 0.0
    %900 = vmatprep.subr.mxu0 0.0
    %901 = vmatpush1.xpose.msra.mxu0 0.0
    %902 = vmatprep.subr.mxu0 0.0
    %903 = vmatpush1.xpose.msra.mxu0 0.0
    %904 = vmatprep.subr.mxu0 0.0
    %905 = vmatpush1.xpose.msra.mxu0 0.0
    %906 = vmatprep.subr.mxu0 0.0
    %907 = vmatpush1.xpose.msra.mxu0 0.0
    %908 = vmatprep.subr.mxu0 0.0
    %909 = vmatpush1.xpose.msra.mxu0 0.0
    %910 = vmatprep.subr.mxu0 0.0
    %911 = vmatpush1.xpose.msra.mxu0 0.0
    %912 = vmatprep.subr.mxu0 0.0
    %913 = vmatpush1.xpose.msra.mxu0 0.0
    %914 = vmatprep.subr.mxu0 0.0
    %915 = vmatpush1.xpose.msra.mxu0 0.0
    %916 = vmatprep.mubr.f32.mxu0 0.0
    %917 = vmatmul.mubr.f32.gmra.mrb[0].mxu0 %v805
    %v918 = vpop.f32.mrb[0].mxu0
    %v919 = vadd.f32 0.0, %v918
    %v920 = vpop.f32.mrb[0].mxu0
    %921 = vmatprep.mubr.f32.mxu0 0.0
    %922 = vmatmul.mubr.f32.gmra.mrb[0].mxu0 %v808
    %v923 = vpop.f32.mrb[0].mxu0
    %v924 = vadd.f32 0.0, %v923
    %v925 = vpop.f32.mrb[0].mxu0
    %926 = vmatprep.mubr.f32.mxu0 0.0
    %927 = vmatmul.mubr.f32.gmra.mrb[0].mxu0 %v811
    %v928 = vpop.f32.mrb[0].mxu0
    %v929 = vadd.f32 0.0, %v928
    %v930 = vpop.f32.mrb[0].mxu0
    %931 = vmatprep.mubr.f32.mxu0 0.0
    %932 = vmatmul.mubr.f32.gmra.mrb[0].mxu0 %v814
    %v933 = vpop.f32.mrb[0].mxu0
    %v934 = vadd.f32 0.0, %v933
    %v935 = vpop.f32.mrb[0].mxu0
    %936 = vmatprep.mubr.f32.mxu0 0.0
    %937 = vmatmul.mubr.f32.gmra.mrb[0].mxu0 %v817
    %v938 = vpop.f32.mrb[0].mxu0
    %v939 = vadd.f32 0.0, %v938
    %v940 = vpop.f32.mrb[0].mxu0
    %941 = vmatprep.mubr.f32.mxu0 0.0
    %942 = vmatmul.mubr.f32.gmra.mrb[0].mxu0 %v820
    %v943 = vpop.f32.mrb[0].mxu0
    %v944 = vadd.f32 0.0, %v943
    %v945 = vpop.f32.mrb[0].mxu0
    %946 = vmatprep.mubr.f32.mxu0 0.0
    %947 = vmatmul.mubr.f32.gmra.mrb[0].mxu0 %v823
    %v948 = vpop.f32.mrb[0].mxu0
    %v949 = vadd.f32 0.0, %v948
    %v950 = vpop.f32.mrb[0].mxu0
    %951 = vmatprep.mubr.f32.mxu0 0.0
    %952 = vmatmul.mubr.f32.gmra.mrb[0].mxu0 %v826
    %v953 = vpop.f32.mrb[0].mxu0
    %v954 = vadd.f32 0.0, %v953
    %v955 = vpop.f32.mrb[0].mxu0
    %956 = vdwg.mxu0
    %vm957 = vcmask 523264
    %v958 = vsel %vm957, %v766, -inf
    %959 = vmax.xlane.f32.xlu0 %v958
    %v960 = vpop.xlane.xlu0 %959
    %v961 = vsel %vm957, %v771, -inf
    %962 = vmax.xlane.f32.xlu0 %v961
    %v963 = vpop.xlane.xlu0 %962
    %v964 = vsel %vm957, %v776, -inf
    %965 = vmax.xlane.f32.xlu0 %v964
    %v966 = vpop.xlane.xlu0 %965
    %v967 = vsel %vm957, %v781, -inf
    %968 = vmax.xlane.f32.xlu0 %v967
    %v969 = vpop.xlane.xlu0 %968
    %v970 = vsel %vm957, %v786, -inf
    %971 = vmax.xlane.f32.xlu0 %v970
    %v972 = vpop.xlane.xlu0 %971
    %v973 = vsel %vm957, %v791, -inf
    %974 = vmax.xlane.f32.xlu0 %v973
    %v975 = vpop.xlane.xlu0 %974
    %v976 = vsel %vm957, %v796, -inf
    %977 = vmax.xlane.f32.xlu0 %v976
    %v978 = vpop.xlane.xlu0 %977
    %v979 = vsel %vm957, %v801, -inf
    %980 = vmax.xlane.f32.xlu0 %v979
    %v981 = vpop.xlane.xlu0 %980
    %v982 = vsel %vm957, %v919, -inf
    %983 = vmax.xlane.f32.xlu0 %v982
    %v984 = vpop.xlane.xlu0 %983
    %v985 = vsel %vm957, %v924, -inf
    %986 = vmax.xlane.f32.xlu0 %v985
    %v987 = vpop.xlane.xlu0 %986
    %v988 = vsel %vm957, %v929, -inf
    %989 = vmax.xlane.f32.xlu0 %v988
    %v990 = vpop.xlane.xlu0 %989
    %v991 = vsel %vm957, %v934, -inf
    %992 = vmax.xlane.f32.xlu0 %v991
    %v993 = vpop.xlane.xlu0 %992
    %v994 = vsel %vm957, %v939, -inf
    %995 = vmax.xlane.f32.xlu0 %v994
    %v996 = vpop.xlane.xlu0 %995
    %v997 = vsel %vm957, %v944, -inf
    %998 = vmax.xlane.f32.xlu0 %v997
    %v999 = vpop.xlane.xlu0 %998
    %v1000 = vsel %vm957, %v949, -inf
    %1001 = vmax.xlane.f32.xlu0 %v1000
    %v1002 = vpop.xlane.xlu0 %1001
    %v1003 = vsel %vm957, %v954, -inf
    %1004 = vmax.xlane.f32.xlu0 %v1003
    %v1005 = vpop.xlane.xlu0 %1004
    %v1006 = vsub.f32 %v766, %v960
    %v1007 = vsub.f32 %v771, %v963
    %v1008 = vsub.f32 %v776, %v966
    %v1009 = vsub.f32 %v781, %v969
    %v1010 = vsub.f32 %v786, %v972
    %v1011 = vsub.f32 %v791, %v975
    %v1012 = vsub.f32 %v796, %v978
    %v1013 = vsub.f32 %v801, %v981
    %v1014 = vsub.f32 %v919, %v984
    %v1015 = vsub.f32 %v924, %v987
    %v1016 = vsub.f32 %v929, %v990
    %v1017 = vsub.f32 %v934, %v993
    %v1018 = vsub.f32 %v939, %v996
    %v1019 = vsub.f32 %v944, %v999
    %v1020 = vsub.f32 %v949, %v1002
    %v1021 = vsub.f32 %v954, %v1005
    %v1022 = vmul.f32 %v1006, 1.442695
    %v1023 = vpow.pop %v1022
    %v1024 = vmul.f32 %v1007, 1.442695
    %v1025 = vpow.pop %v1024
    %v1026 = vmul.f32 %v1008, 1.442695
    %v1027 = vpow.pop %v1026
    %v1028 = vmul.f32 %v1009, 1.442695
    %v1029 = vpow.pop %v1028
    %v1030 = vmul.f32 %v1010, 1.442695
    %v1031 = vpow.pop %v1030
    %v1032 = vmul.f32 %v1011, 1.442695
    %v1033 = vpow.pop %v1032
    %v1034 = vmul.f32 %v1012, 1.442695
    %v1035 = vpow.pop %v1034
    %v1036 = vmul.f32 %v1013, 1.442695
    %v1037 = vpow.pop %v1036
    %v1038 = vmul.f32 %v1014, 1.442695
    %v1039 = vpow.pop %v1038
    %v1040 = vmul.f32 %v1015, 1.442695
    %v1041 = vpow.pop %v1040
    %v1042 = vmul.f32 %v1016, 1.442695
    %v1043 = vpow.pop %v1042
    %v1044 = vmul.f32 %v1017, 1.442695
    %v1045 = vpow.pop %v1044
    %v1046 = vmul.f32 %v1018, 1.442695
    %v1047 = vpow.pop %v1046
    %v1048 = vmul.f32 %v1019, 1.442695
    %v1049 = vpow.pop %v1048
    %v1050 = vmul.f32 %v1020, 1.442695
    %v1051 = vpow.pop %v1050
    %v1052 = vmul.f32 %v1021, 1.442695
    %v1053 = vpow.pop %v1052
    %v1054 = vsel %vm957, %v1023, 0.0
    %1055 = vadd.xlane.f32.xlu0 %v1054
    %v1056 = vpop.xlane.xlu0 %1055
    %v1057 = vsel %vm957, %v1025, 0.0
    %1058 = vadd.xlane.f32.xlu0 %v1057
    %v1059 = vpop.xlane.xlu0 %1058
    %v1060 = vsel %vm957, %v1027, 0.0
    %1061 = vadd.xlane.f32.xlu0 %v1060
    %v1062 = vpop.xlane.xlu0 %1061
    %v1063 = vsel %vm957, %v1029, 0.0
    %1064 = vadd.xlane.f32.xlu0 %v1063
    %v1065 = vpop.xlane.xlu0 %1064
    %v1066 = vsel %vm957, %v1031, 0.0
    %1067 = vadd.xlane.f32.xlu0 %v1066
    %v1068 = vpop.xlane.xlu0 %1067
    %v1069 = vsel %vm957, %v1033, 0.0
    %1070 = vadd.xlane.f32.xlu0 %v1069
    %v1071 = vpop.xlane.xlu0 %1070
    %v1072 = vsel %vm957, %v1035, 0.0
    %1073 = vadd.xlane.f32.xlu0 %v1072
    %v1074 = vpop.xlane.xlu0 %1073
    %v1075 = vsel %vm957, %v1037, 0.0
    %1076 = vadd.xlane.f32.xlu0 %v1075
    %v1077 = vpop.xlane.xlu0 %1076
    %v1078 = vsel %vm957, %v1039, 0.0
    %1079 = vadd.xlane.f32.xlu0 %v1078
    %v1080 = vpop.xlane.xlu0 %1079
    %v1081 = vsel %vm957, %v1041, 0.0
    %1082 = vadd.xlane.f32.xlu0 %v1081
    %v1083 = vpop.xlane.xlu0 %1082
    %v1084 = vsel %vm957, %v1043, 0.0
    %1085 = vadd.xlane.f32.xlu0 %v1084
    %v1086 = vpop.xlane.xlu0 %1085
    %v1087 = vsel %vm957, %v1045, 0.0
    %1088 = vadd.xlane.f32.xlu0 %v1087
    %v1089 = vpop.xlane.xlu0 %1088
    %v1090 = vsel %vm957, %v1047, 0.0
    %1091 = vadd.xlane.f32.xlu0 %v1090
    %v1092 = vpop.xlane.xlu0 %1091
    %v1093 = vsel %vm957, %v1049, 0.0
    %1094 = vadd.xlane.f32.xlu0 %v1093
    %v1095 = vpop.xlane.xlu0 %1094
    %v1096 = vsel %vm957, %v1051, 0.0
    %1097 = vadd.xlane.f32.xlu0 %v1096
    %v1098 = vpop.xlane.xlu0 %1097
    %v1099 = vsel %vm957, %v1053, 0.0
    %1100 = vadd.xlane.f32.xlu0 %v1099
    %v1101 = vpop.xlane.xlu0 %1100
    %v1102 = vrcp.pop %v1056
    %v1103 = vrcp.pop %v1059
    %v1104 = vrcp.pop %v1062
    %v1105 = vrcp.pop %v1065
    %v1106 = vrcp.pop %v1068
    %v1107 = vrcp.pop %v1071
    %v1108 = vrcp.pop %v1074
    %v1109 = vrcp.pop %v1077
    %v1110 = vrcp.pop %v1080
    %v1111 = vrcp.pop %v1083
    %v1112 = vrcp.pop %v1086
    %v1113 = vrcp.pop %v1089
    %v1114 = vrcp.pop %v1092
    %v1115 = vrcp.pop %v1095
    %v1116 = vrcp.pop %v1098
    %v1117 = vrcp.pop %v1101
    %v1118 = vmul.f32 %v1023, %v1102
    %v1119 = vmul.f32 %v1025, %v1103
    %v1120 = vmul.f32 %v1027, %v1104
    %v1121 = vmul.f32 %v1029, %v1105
    %v1122 = vmul.f32 %v1031, %v1106
    %v1123 = vmul.f32 %v1033, %v1107
    %v1124 = vmul.f32 %v1035, %v1108
    %v1125 = vmul.f32 %v1037, %v1109
    %v1126 = vmul.f32 %v1039, %v1110
    %v1127 = vmul.f32 %v1041, %v1111
    %v1128 = vmul.f32 %v1043, %v1112
    %v1129 = vmul.f32 %v1045, %v1113
    %v1130 = vmul.f32 %v1047, %v1114
    %v1131 = vmul.f32 %v1049, %v1115
    %v1132 = vmul.f32 %v1051, %v1116
    %v1133 = vmul.f32 %v1053, %v1117
    %v1135 = vsel %vm957, %v1118, 0
    %v1138 = vsel %vm957, %v1119, 0
    %v1141 = vsel %vm957, %v1120, 0
    %v1144 = vsel %vm957, %v1121, 0
    %v1147 = vsel %vm957, %v1122, 0
    %v1150 = vsel %vm957, %v1123, 0
    %v1153 = vsel %vm957, %v1124, 0
    %v1156 = vsel %vm957, %v1125, 0
    %1158 = vmatprep.subr.mxu0 0.0
    %1159 = vmatpush1.msra.mxu0 %v572
    %1160 = vmatprep.subr.mxu0 0.0
    %1161 = vmatpush1.msra.mxu0 %v577
    %1162 = vmatprep.subr.mxu0 0.0
    %1163 = vmatpush1.msra.mxu0 %v582
    %1164 = vmatprep.subr.mxu0 0.0
    %1165 = vmatpush1.msra.mxu0 %v587
    %1166 = vmatprep.subr.mxu0 0.0
    %1167 = vmatpush1.msra.mxu0 %v592
    %1168 = vmatprep.subr.mxu0 0.0
    %1169 = vmatpush1.msra.mxu0 %v597
    %1170 = vmatprep.subr.mxu0 0.0
    %1171 = vmatpush1.msra.mxu0 %v602
    %1172 = vmatprep.subr.mxu0 0.0
    %1173 = vmatpush1.msra.mxu0 %v607
    %1174 = vmatprep.subr.mxu0 0.0
    %1175 = vmatpush1.msra.mxu0 0.0
    %1176 = vmatprep.subr.mxu0 0.0
    %1177 = vmatpush1.msra.mxu0 0.0
    %1178 = vmatprep.subr.mxu0 0.0
    %1179 = vmatpush1.msra.mxu0 0.0
    %1180 = vmatprep.subr.mxu0 0.0
    %1181 = vmatpush1.msra.mxu0 0.0
    %1182 = vmatprep.subr.mxu0 0.0
    %1183 = vmatpush1.msra.mxu0 0.0
    %1184 = vmatprep.subr.mxu0 0.0
    %1185 = vmatpush1.msra.mxu0 0.0
    %1186 = vmatprep.subr.mxu0 0.0
    %1187 = vmatpush1.msra.mxu0 0.0
    %1188 = vmatprep.subr.mxu0 0.0
    %1189 = vmatpush1.msra.mxu0 0.0
    %1190 = vmatprep.subr.mxu0 0.0
    %1191 = vmatpush1.msra.mxu0 0.0
    %1192 = vmatprep.subr.mxu0 0.0
    %1193 = vmatpush1.msra.mxu0 0.0
    %1194 = vmatprep.subr.mxu0 0.0
    %1195 = vmatpush1.msra.mxu0 0.0
    %1196 = vmatprep.subr.mxu0 0.0
    %1197 = vmatpush1.msra.mxu0 0.0
    %1198 = vmatprep.subr.mxu0 0.0
    %1199 = vmatpush1.msra.mxu0 0.0
    %1200 = vmatprep.subr.mxu0 0.0
    %1201 = vmatpush1.msra.mxu0 0.0
    %1202 = vmatprep.subr.mxu0 0.0
    %1203 = vmatpush1.msra.mxu0 0.0
    %1204 = vmatprep.subr.mxu0 0.0
    %1205 = vmatpush1.msra.mxu0 0.0
    %1206 = vmatprep.subr.mxu0 0.0
    %1207 = vmatpush1.msra.mxu0 0.0
    %1208 = vmatprep.subr.mxu0 0.0
    %1209 = vmatpush1.msra.mxu0 0.0
    %1210 = vmatprep.subr.mxu0 0.0
    %1211 = vmatpush1.msra.mxu0 0.0
    %1212 = vmatprep.subr.mxu0 0.0
    %1213 = vmatpush1.msra.mxu0 0.0
    %1214 = vmatprep.subr.mxu0 0.0
    %1215 = vmatpush1.msra.mxu0 0.0
    %1216 = vmatprep.subr.mxu0 0.0
    %1217 = vmatpush1.msra.mxu0 0.0
    %1218 = vmatprep.subr.mxu0 0.0
    %1219 = vmatpush1.msra.mxu0 0.0
    %1220 = vmatprep.subr.mxu0 0.0
    %1221 = vmatpush1.msra.mxu0 0.0
    %1222 = vmatprep.mubr.f32.mxu0 0.0
    %1223 = vmatmul.mubr.f32.gmra.mrb[0].mxu0 %v1135
    %v1224 = vpop.f32.mrb[0].mxu0
    %v1225 = vadd.f32 0.0, %v1224
    %v1226 = vpop.f32.mrb[0].mxu0
    %1227 = vmatprep.mubr.f32.mxu0 0.0
    %1228 = vmatmul.mubr.f32.gmra.mrb[0].mxu0 %v1138
    %v1229 = vpop.f32.mrb[0].mxu0
    %v1230 = vadd.f32 0.0, %v1229
    %v1231 = vpop.f32.mrb[0].mxu0
    %1232 = vmatprep.mubr.f32.mxu0 0.0
    %1233 = vmatmul.mubr.f32.gmra.mrb[0].mxu0 %v1141
    %v1234 = vpop.f32.mrb[0].mxu0
    %v1235 = vadd.f32 0.0, %v1234
    %v1236 = vpop.f32.mrb[0].mxu0
    %1237 = vmatprep.mubr.f32.mxu0 0.0
    %1238 = vmatmul.mubr.f32.gmra.mrb[0].mxu0 %v1144
    %v1239 = vpop.f32.mrb[0].mxu0
    %v1240 = vadd.f32 0.0, %v1239
    %v1241 = vpop.f32.mrb[0].mxu0
    %1242 = vmatprep.mubr.f32.mxu0 0.0
    %1243 = vmatmul.mubr.f32.gmra.mrb[0].mxu0 %v1147
    %v1244 = vpop.f32.mrb[0].mxu0
    %v1245 = vadd.f32 0.0, %v1244
    %v1246 = vpop.f32.mrb[0].mxu0
    %1247 = vmatprep.mubr.f32.mxu0 0.0
    %1248 = vmatmul.mubr.f32.gmra.mrb[0].mxu0 %v1150
    %v1249 = vpop.f32.mrb[0].mxu0
    %v1250 = vadd.f32 0.0, %v1249
    %v1251 = vpop.f32.mrb[0].mxu0
    %1252 = vmatprep.mubr.f32.mxu0 0.0
    %1253 = vmatmul.mubr.f32.gmra.mrb[0].mxu0 %v1153
    %v1254 = vpop.f32.mrb[0].mxu0
    %v1255 = vadd.f32 0.0, %v1254
    %v1256 = vpop.f32.mrb[0].mxu0
    %1257 = vmatprep.mubr.f32.mxu0 0.0
    %1258 = vmatmul.mubr.f32.gmra.mrb[0].mxu0 %v1156
    %v1259 = vpop.f32.mrb[0].mxu0
    %v1260 = vadd.f32 0.0, %v1259
    %v1261 = vpop.f32.mrb[0].mxu0
    %1262 = vdwg.mxu0
    %v1264 = vsel %vm957, %v1126, 0
    %v1267 = vsel %vm957, %v1127, 0
    %v1270 = vsel %vm957, %v1128, 0
    %v1273 = vsel %vm957, %v1129, 0
    %v1276 = vsel %vm957, %v1130, 0
    %v1279 = vsel %vm957, %v1131, 0
    %v1282 = vsel %vm957, %v1132, 0
    %v1285 = vsel %vm957, %v1133, 0
    %1287 = vmatprep.subr.mxu0 0.0
    %1288 = vmatpush1.msra.mxu0 %v612
    %1289 = vmatprep.subr.mxu0 0.0
    %1290 = vmatpush1.msra.mxu0 %v617
    %1291 = vmatprep.subr.mxu0 0.0
    %1292 = vmatpush1.msra.mxu0 %v622
    %1293 = vmatprep.subr.mxu0 0.0
    %1294 = vmatpush1.msra.mxu0 %v627
    %1295 = vmatprep.subr.mxu0 0.0
    %1296 = vmatpush1.msra.mxu0 %v632
    %1297 = vmatprep.subr.mxu0 0.0
    %1298 = vmatpush1.msra.mxu0 %v637
    %1299 = vmatprep.subr.mxu0 0.0
    %1300 = vmatpush1.msra.mxu0 %v642
    %1301 = vmatprep.subr.mxu0 0.0
    %1302 = vmatpush1.msra.mxu0 %v647
    %1303 = vmatprep.subr.mxu0 0.0
    %1304 = vmatpush1.msra.mxu0 0.0
    %1305 = vmatprep.subr.mxu0 0.0
    %1306 = vmatpush1.msra.mxu0 0.0
    %1307 = vmatprep.subr.mxu0 0.0
    %1308 = vmatpush1.msra.mxu0 0.0
    %1309 = vmatprep.subr.mxu0 0.0
    %1310 = vmatpush1.msra.mxu0 0.0
    %1311 = vmatprep.subr.mxu0 0.0
    %1312 = vmatpush1.msra.mxu0 0.0
    %1313 = vmatprep.subr.mxu0 0.0
    %1314 = vmatpush1.msra.mxu0 0.0
    %1315 = vmatprep.subr.mxu0 0.0
    %1316 = vmatpush1.msra.mxu0 0.0
    %1317 = vmatprep.subr.mxu0 0.0
    %1318 = vmatpush1.msra.mxu0 0.0
    %1319 = vmatprep.subr.mxu0 0.0
    %1320 = vmatpush1.msra.mxu0 0.0
    %1321 = vmatprep.subr.mxu0 0.0
    %1322 = vmatpush1.msra.mxu0 0.0
    %1323 = vmatprep.subr.mxu0 0.0
    %1324 = vmatpush1.msra.mxu0 0.0
    %1325 = vmatprep.subr.mxu0 0.0
    %1326 = vmatpush1.msra.mxu0 0.0
    %1327 = vmatprep.subr.mxu0 0.0
    %1328 = vmatpush1.msra.mxu0 0.0
    %1329 = vmatprep.subr.mxu0 0.0
    %1330 = vmatpush1.msra.mxu0 0.0
    %1331 = vmatprep.subr.mxu0 0.0
    %1332 = vmatpush1.msra.mxu0 0.0
    %1333 = vmatprep.subr.mxu0 0.0
    %1334 = vmatpush1.msra.mxu0 0.0
    %1335 = vmatprep.subr.mxu0 0.0
    %1336 = vmatpush1.msra.mxu0 0.0
    %1337 = vmatprep.subr.mxu0 0.0
    %1338 = vmatpush1.msra.mxu0 0.0
    %1339 = vmatprep.subr.mxu0 0.0
    %1340 = vmatpush1.msra.mxu0 0.0
    %1341 = vmatprep.subr.mxu0 0.0
    %1342 = vmatpush1.msra.mxu0 0.0
    %1343 = vmatprep.subr.mxu0 0.0
    %1344 = vmatpush1.msra.mxu0 0.0
    %1345 = vmatprep.subr.mxu0 0.0
    %1346 = vmatpush1.msra.mxu0 0.0
    %1347 = vmatprep.subr.mxu0 0.0
    %1348 = vmatpush1.msra.mxu0 0.0
    %1349 = vmatprep.subr.mxu0 0.0
    %1350 = vmatpush1.msra.mxu0 0.0
    %1351 = vmatprep.mubr.f32.mxu0 0.0
    %1352 = vmatmul.mubr.f32.gmra.mrb[0].mxu0 %v1264
    %v1353 = vpop.f32.mrb[0].mxu0
    %v1354 = vadd.f32 0.0, %v1353
    %v1355 = vpop.f32.mrb[0].mxu0
    %1356 = vmatprep.mubr.f32.mxu0 0.0
    %1357 = vmatmul.mubr.f32.gmra.mrb[0].mxu0 %v1267
    %v1358 = vpop.f32.mrb[0].mxu0
    %v1359 = vadd.f32 0.0, %v1358
    %v1360 = vpop.f32.mrb[0].mxu0
    %1361 = vmatprep.mubr.f32.mxu0 0.0
    %1362 = vmatmul.mubr.f32.gmra.mrb[0].mxu0 %v1270
    %v1363 = vpop.f32.mrb[0].mxu0
    %v1364 = vadd.f32 0.0, %v1363
    %v1365 = vpop.f32.mrb[0].mxu0
    %1366 = vmatprep.mubr.f32.mxu0 0.0
    %1367 = vmatmul.mubr.f32.gmra.mrb[0].mxu0 %v1273
    %v1368 = vpop.f32.mrb[0].mxu0
    %v1369 = vadd.f32 0.0, %v1368
    %v1370 = vpop.f32.mrb[0].mxu0
    %1371 = vmatprep.mubr.f32.mxu0 0.0
    %1372 = vmatmul.mubr.f32.gmra.mrb[0].mxu0 %v1276
    %v1373 = vpop.f32.mrb[0].mxu0
    %v1374 = vadd.f32 0.0, %v1373
    %v1375 = vpop.f32.mrb[0].mxu0
    %1376 = vmatprep.mubr.f32.mxu0 0.0
    %1377 = vmatmul.mubr.f32.gmra.mrb[0].mxu0 %v1279
    %v1378 = vpop.f32.mrb[0].mxu0
    %v1379 = vadd.f32 0.0, %v1378
    %v1380 = vpop.f32.mrb[0].mxu0
    %1381 = vmatprep.mubr.f32.mxu0 0.0
    %1382 = vmatmul.mubr.f32.gmra.mrb[0].mxu0 %v1282
    %v1383 = vpop.f32.mrb[0].mxu0
    %v1384 = vadd.f32 0.0, %v1383
    %v1385 = vpop.f32.mrb[0].mxu0
    %1386 = vmatprep.mubr.f32.mxu0 0.0
    %1387 = vmatmul.mubr.f32.gmra.mrb[0].mxu0 %v1285
    %v1388 = vpop.f32.mrb[0].mxu0
    %v1389 = vadd.f32 0.0, %v1388
    %v1390 = vpop.f32.mrb[0].mxu0
    %1391 = vdwg.mxu0
    %1392 = vxpose.xlu0.b32.start [1/16] %v1225, 128
    %1393 = vxpose.xlu0.b32.cont [2/16] %v1230, 128
    %1394 = vxpose.xlu0.b32.cont [3/16] %v1235, 128
    %1395 = vxpose.xlu0.b32.cont [4/16] %v1240, 128
    %1396 = vxpose.xlu0.b32.cont [5/16] %v1245, 128
    %1397 = vxpose.xlu0.b32.cont [6/16] %v1250, 128
    %1398 = vxpose.xlu0.b32.cont [7/16] %v1255, 128
    %1399 = vxpose.xlu0.b32.cont [8/16] %v1260, 128
    %1400 = vxpose.xlu0.b32.cont [9/16] 0.0, 128
    %1401 = vxpose.xlu0.b32.cont [10/16] 0.0, 128
    %1402 = vxpose.xlu0.b32.cont [11/16] 0.0, 128
    %1403 = vxpose.xlu0.b32.cont [12/16] 0.0, 128
    %1404 = vxpose.xlu0.b32.cont [13/16] 0.0, 128
    %1405 = vxpose.xlu0.b32.cont [14/16] 0.0, 128
    %1406 = vxpose.xlu0.b32.cont [15/16] 0.0, 128
    %1407 = vxpose.xlu0.b32.end [16/16] 0.0, 128
    %v1408 = vpop.trf.xlu0
    %v1409 = vpop.trf.xlu0
    %v1410 = vpop.trf.xlu0
    %v1411 = vpop.trf.xlu0
    %v1412 = vpop.trf.xlu0
    %v1413 = vpop.trf.xlu0
    %v1414 = vpop.trf.xlu0
    %v1415 = vpop.trf.xlu0
    %v1416 = vpop.trf.xlu0
    %v1417 = vpop.trf.xlu0
    %v1418 = vpop.trf.xlu0
    %v1419 = vpop.trf.xlu0
    %v1420 = vpop.trf.xlu0
    %v1421 = vpop.trf.xlu0
    %v1422 = vpop.trf.xlu0
    %v1423 = vpop.trf.xlu0
    %1424 = vxpose.xlu0.b32.start [1/16] %v1354, 128
    %1425 = vxpose.xlu0.b32.cont [2/16] %v1359, 128
    %1426 = vxpose.xlu0.b32.cont [3/16] %v1364, 128
    %1427 = vxpose.xlu0.b32.cont [4/16] %v1369, 128
    %1428 = vxpose.xlu0.b32.cont [5/16] %v1374, 128
    %1429 = vxpose.xlu0.b32.cont [6/16] %v1379, 128
    %1430 = vxpose.xlu0.b32.cont [7/16] %v1384, 128
    %1431 = vxpose.xlu0.b32.cont [8/16] %v1389, 128
    %1432 = vxpose.xlu0.b32.cont [9/16] 0.0, 128
    %1433 = vxpose.xlu0.b32.cont [10/16] 0.0, 128
    %1434 = vxpose.xlu0.b32.cont [11/16] 0.0, 128
    %1435 = vxpose.xlu0.b32.cont [12/16] 0.0, 128
    %1436 = vxpose.xlu0.b32.cont [13/16] 0.0, 128
    %1437 = vxpose.xlu0.b32.cont [14/16] 0.0, 128
    %1438 = vxpose.xlu0.b32.cont [15/16] 0.0, 128
    %1439 = vxpose.xlu0.b32.end [16/16] 0.0, 128
    %v1440 = vpop.trf.xlu0
    %v1441 = vpop.trf.xlu0
    %v1442 = vpop.trf.xlu0
    %v1443 = vpop.trf.xlu0
    %v1444 = vpop.trf.xlu0
    %v1445 = vpop.trf.xlu0
    %v1446 = vpop.trf.xlu0
    %v1447 = vpop.trf.xlu0
    %v1448 = vpop.trf.xlu0
    %v1449 = vpop.trf.xlu0
    %v1450 = vpop.trf.xlu0
    %v1451 = vpop.trf.xlu0
    %v1452 = vpop.trf.xlu0
    %v1453 = vpop.trf.xlu0
    %v1454 = vpop.trf.xlu0
    %v1455 = vpop.trf.xlu0
    %s1456 = sld [smem:[#allocation2]]
    %v1457 = vstv %s1456
    %v1458 = vmul.f32 %v1457, %v1408
    %v1459 = vmul.f32 %v1457, %v1409
    %v1460 = vmul.f32 %v1457, %v1410
    %v1461 = vmul.f32 %v1457, %v1411
    %v1462 = vmul.f32 %v1457, %v1440
    %v1463 = vmul.f32 %v1457, %v1441
    %v1464 = vmul.f32 %v1457, %v1442
    %v1465 = vmul.f32 %v1457, %v1443
    %v1466 = vadd.f32 %v1458, %v45
    %v1467 = vadd.f32 %v1459, %v46
    %v1468 = vadd.f32 %v1460, %v47
    %v1469 = vadd.f32 %v1461, %v48
    %v1470 = vadd.f32 %v1462, %v49
    %v1471 = vadd.f32 %v1463, %v50
    %v1472 = vadd.f32 %v1464, %v51
    %v1473 = vadd.f32 %v1465, %v52
    %1474 = vst.msk [vmem:[#allocation6] sm:$0xff] %vm957, %v1466
    %1475 = vst.msk [vmem:[#allocation6 + $0x8] sm:$0xff] %vm957, %v1467
    %1476 = vst.msk [vmem:[#allocation6 + $0x10] sm:$0xff] %vm957, %v1468
    %1477 = vst.msk [vmem:[#allocation6 + $0x18] sm:$0xff] %vm957, %v1469
    %1478 = vst.msk [vmem:[#allocation6 + $0x20] sm:$0xff] %vm957, %v1470
    %1479 = vst.msk [vmem:[#allocation6 + $0x28] sm:$0xff] %vm957, %v1471
    %1480 = vst.msk [vmem:[#allocation6 + $0x30] sm:$0xff] %vm957, %v1472
    %1481 = vst.msk [vmem:[#allocation6 + $0x38] sm:$0xff] %vm957, %v1473
    // Predicated region
    $region38: #{tpu_custom_call.1} parent=1 // pred_check
      _
    $region39: #{tpu_custom_call.1} parent=1 // pred_check_branch
      %1483 = sbr.rel (0) target = $region41
    $region40: #{tpu_custom_call.1} parent=1 // pred_region
      %s1485 = ssub.s32 1024, 1024
      %1486 = vsyncadd [#allocation5], %s1485
      %s1487 = sshll.u32 [#allocation6], 4
      %s1488 = int_to_ptr.vmem [resolvable:$true] %s1487
      %1493 = dma.vmem_to_hbm [thread:$0]  %s1488, 1024, %s8, [#allocation5], 128, 128, 8
    $region41: #{tpu_custom_call.1} parent=1 // pred_fallthru
      _
    // Predicated region
    $region42: #{tpu_custom_call.1} parent=1 // pred_check
      _
    $region43: #{tpu_custom_call.1} parent=1 // pred_check_branch
      %1495 = sbr.rel (0) target = $region45
    $region44: #{tpu_custom_call.1} parent=1 // pred_region
      %1496 = dma.done [#allocation5], 1024
    $region45: #{tpu_custom_call.1} parent=1 // pred_fallthru
      _
    %1497 = vsyncpa [#allocation4], 1
    %1498 = vsyncpa [#allocation5], 1

</llo_original>
